<compile_context>
chip_gen: v7x
topology: tpu7x:2x2x1
jax: 0.10.0
libtpu: 0.0.40
codegen_flags: <defaults>
</compile_context>

<pallas_src>
import jax
import jax.numpy as jnp
from jax.experimental import pallas as pl
from jax.experimental.pallas import tpu as pltpu


# ----------------------------- kernel ----------------------------------------
def _make_kernel(n_phi, n_cls, n_lor, general_w, invariant_w):
    """Fused kernel for fixed layer counts. All activations are (D, tile_b):
    features on sublanes, batch on lanes (lane-dense everywhere)."""

    def kernel(x_ref, *refs):
        out_ref = refs[-1]
        prm = refs[:-1]
        i = 0
        r_sum = prm[0]; i = 1                       # (4, 32) particle-sum selector
        phi_p = prm[i:i + 2 * n_phi]; i += 2 * n_phi
        cls_p = prm[i:i + 2 * n_cls]; i += 2 * n_cls
        lor_p = prm[i:i + 2 * n_lor]; i += 2 * n_lor

        xt = x_ref[...].astype(jnp.float32)         # (32, TB), batch on lanes

        def dense(w_ref, b_ref, h, relu):
            w = w_ref[...].astype(jnp.float32)      # (d_out, d_in)
            b = b_ref[...].astype(jnp.float32)      # (d_out, 1)
            if w.shape[1] == 1:
                # K == 1: outer product on the VPU (cheaper than an MXU call)
                z = w * h + b
            else:
                z = jnp.dot(w, h, preferred_element_type=jnp.float32) + b
            return jnp.maximum(z, 0.0) if relu else z

        # ---- ParticleFlowNetwork: per-particle mapping Phi -------------------
        # Block-diagonal weights => one (8*H, 8*H_prev) @ (8*H_prev, TB) matmul
        # per layer; particle p lives in sublane rows [p*H, (p+1)*H).
        h = xt
        for l in range(n_phi):
            h = dense(phi_p[2 * l], phi_p[2 * l + 1], h, relu=True)

        # ---- ParticleFlowNetwork: classifier F --------------------------------
        # The particle sum is pre-folded into the first classifier weight
        # (tiled 8x along its input dim), so this is a plain MLP on h.
        g = h
        for l in range(n_cls):
            g = dense(cls_p[2 * l], cls_p[2 * l + 1], g, relu=(l < n_cls - 1))
        general = jax.nn.sigmoid(g)                 # (1, TB)

        # ---- LorenzInvariantNetwork -------------------------------------------
        p_tot = jnp.dot(r_sum[...], xt, preferred_element_type=jnp.float32)  # (4, TB)
        p2 = p_tot * p_tot
        # m^2 = E^2 - px^2 - py^2 - pz^2 = 2*E^2 - sum(p^2)
        m2 = 2.0 * p2[0:1, :] - jnp.sum(p2, axis=0, keepdims=True)           # (1, TB)
        z = m2
        for l in range(n_lor):
            z = dense(lor_p[2 * l], lor_p[2 * l + 1], z, relu=(l < n_lor - 1))
        invariant = jax.nn.sigmoid(z)               # (1, TB)

        # ---- weighted combination (lane-dense row store) ----------------------
        out = general_w * general + invariant_w * invariant                  # (1, TB)
        out_ref[...] = out.astype(out_ref.dtype)

    return kernel


# ------------------------ parameter preparation (wrapper) ---------------------
def _prep_params(params, n_particles):
    """Transpose to (d_out, d_in) 'weights @ activations' form, expand the
    shared per-particle Phi weights to block-diagonal matrices, fold the
    particle sum into the first classifier layer, build the 4-momentum
    summation selector. All done once, outside the kernel."""
    map_p, cls_p, lor_p = params
    P = n_particles
    flat = []

    # total-4-momentum selector: (4, 4*P), R[c, 4p+c] = 1
    flat.append(jnp.tile(jnp.eye(4, dtype=jnp.float32), (1, P)))

    # Phi: block-diagonal transposed weights + tiled biases
    for (w, b) in map_p:                                  # w: (d_in, d_out), b: (1, d_out)
        flat.append(jnp.kron(jnp.eye(P, dtype=w.dtype), w.T))   # (P*d_out, P*d_in)
        flat.append(jnp.tile(b.reshape(-1, 1), (P, 1)))         # (P*d_out, 1)

    # classifier F: first layer absorbs the particle sum (tile along d_in)
    for l, (w, b) in enumerate(cls_p):
        wt = w.T                                          # (d_out, d_in)
        if l == 0:
            wt = jnp.tile(wt, (1, P))                     # (d_out, P*d_in)
        flat.append(wt)
        flat.append(b.reshape(-1, 1))

    # Lorentz-invariant MLP
    for (w, b) in lor_p:
        flat.append(w.T)
        flat.append(b.reshape(-1, 1))

    return flat


# ----------------------------- wrapper ----------------------------------------
def weighted_hybrid_classifier(x, params, invariant_network_weight, *, tile_b=None):
    B, P, F = x.shape
    flat = _prep_params(params, P)

    if tile_b is None:
        # Large lane-dense tiles; at production batch sizes this yields >= 2
        # grid steps (both v7x TensorCores) and amortizes per-step overhead.
        tile_b = max(128, min(1024, 128 * pl.cdiv(B, 256)))
    else:
        tile_b = max(128, 128 * pl.cdiv(tile_b, 128))     # keep lane multiple

    B_pad = tile_b * pl.cdiv(B, tile_b)
    num_tiles = B_pad // tile_b

    # Layout plumbing (wrapper side): flatten particles/features and put the
    # batch on the lane axis -> (P*F, B_pad).
    x2 = x.reshape(B, P * F)
    if B_pad != B:
        x2 = jnp.pad(x2, ((0, B_pad - B), (0, 0)))
    xt = x2.T

    kernel = _make_kernel(
        len(params[0]), len(params[1]), len(params[2]),
        1.0 - float(invariant_network_weight), float(invariant_network_weight))

    x_spec = pl.BlockSpec((P * F, tile_b), lambda i: (0, i))
    param_specs = [pl.BlockSpec(p.shape, lambda i: (0, 0)) for p in flat]
    out_spec = pl.BlockSpec((1, tile_b), lambda i: (i, 0))   # lane-dense output row

    # Advisory cost estimate (the kernel is HBM-read bound on x).
    flops = 0
    for w in flat:
        if w.shape[1] > 1:
            flops += 2 * int(w.shape[0]) * int(w.shape[1]) * B_pad
    cost = pl.CostEstimate(
        flops=int(flops),
        transcendentals=int(2 * B_pad),
        bytes_accessed=int(xt.size * xt.dtype.itemsize + 4 * B_pad
                           + sum(int(p.size) * p.dtype.itemsize for p in flat)))

    out = pl.pallas_call(
        kernel,
        out_shape=jax.ShapeDtypeStruct((num_tiles, tile_b), jnp.float32),
        grid=(num_tiles,),
        in_specs=[x_spec] + param_specs,
        out_specs=out_spec,
        compiler_params=pltpu.CompilerParams(
            dimension_semantics=("parallel",),
            vmem_limit_bytes=32 * 1024 * 1024),
        cost_estimate=cost,
    )(xt, *flat)

    return out.reshape(B_pad, 1)[:B]


# -------------------------- parameter init (deterministic) --------------------
def init_params(key, latent_dim, map_hidden, cls_hidden, lor_hidden):
    def mlp(key, dims):
        layers = []
        for din, dout in zip(dims[:-1], dims[1:]):
            key, kw, kb = jax.random.split(key, 3)
            w = jax.random.normal(kw, (din, dout), jnp.float32) / jnp.sqrt(float(din))
            b = 0.01 * jax.random.normal(kb, (1, dout), jnp.float32)
            layers.append((w, b))
        return key, layers

    key, map_p = mlp(key, [4] + list(map_hidden) + [latent_dim])
    key, cls_p = mlp(key, [latent_dim] + list(cls_hidden) + [1])
    key, lor_p = mlp(key, [1] + list(lor_hidden) + [1])
    return map_p, cls_p, lor_p


# -------------------------- pure-JAX reference (for checking) -----------------
def reference(x, params, invariant_network_weight):
    map_p, cls_p, lor_p = params
    h = x
    for (w, b) in map_p:
        h = jnp.maximum(jnp.einsum('bpf,fh->bph', h, w) + b[None], 0.0)
    latent = h.sum(axis=1)
    g = latent
    for l, (w, b) in enumerate(cls_p):
        g = g @ w + b
        if l < len(cls_p) - 1:
            g = jnp.maximum(g, 0.0)
    general = jax.nn.sigmoid(g)
    p = x.sum(axis=1)
    m2 = (p[:, 0:1] ** 2 - p[:, 1:2] ** 2 - p[:, 2:3] ** 2 - p[:, 3:4] ** 2)
    z = m2
    for l, (w, b) in enumerate(lor_p):
        z = z @ w + b
        if l < len(lor_p) - 1:
            z = jnp.maximum(z, 0.0)
    invariant = jax.nn.sigmoid(z)
    return (1.0 - invariant_network_weight) * general + invariant_network_weight * invariant


if __name__ == "__main__":
    key = jax.random.PRNGKey(0)
    kx, kp = jax.random.split(key)

    B, P, F = 16, 8, 4                      # batch, particles, 4-vector features
    latent_space_dim = 32
    pfn_mapping_hidden = [32]
    pfn_classifier_hidden = [32]
    lorenz_invariant_hidden = [16]
    invariant_network_weight = 0.3

    x = jax.random.normal(kx, (B, P, F), jnp.float32)
    params = init_params(kp, latent_space_dim, pfn_mapping_hidden,
                         pfn_classifier_hidden, lorenz_invariant_hidden)

    out = weighted_hybrid_classifier(x, params, invariant_network_weight)
    out = jax.block_until_ready(out)

    ref = reference(x, params, invariant_network_weight)
    assert out.shape == (B, 1)
    assert jnp.allclose(out, ref, atol=1e-4, rtol=1e-4), (out, ref)
    print("KERNEL_OK")
</pallas_src>

<mosaic_0001>
module attributes {stable_mosaic.version = 11 : i64} {
  func.func @kernel(%arg0: i32, %arg1: memref<32x128xf32, #tpu.memory_space<vmem>>, %arg2: memref<4x32xf32, #tpu.memory_space<vmem>>, %arg3: memref<256x32xf32, #tpu.memory_space<vmem>>, %arg4: memref<256x1xf32, #tpu.memory_space<vmem>>, %arg5: memref<256x256xf32, #tpu.memory_space<vmem>>, %arg6: memref<256x1xf32, #tpu.memory_space<vmem>>, %arg7: memref<32x256xf32, #tpu.memory_space<vmem>>, %arg8: memref<32x1xf32, #tpu.memory_space<vmem>>, %arg9: memref<1x32xf32, #tpu.memory_space<vmem>>, %arg10: memref<1x1xf32, #tpu.memory_space<vmem>>, %arg11: memref<16x1xf32, #tpu.memory_space<vmem>>, %arg12: memref<16x1xf32, #tpu.memory_space<vmem>>, %arg13: memref<1x16xf32, #tpu.memory_space<vmem>>, %arg14: memref<1x1xf32, #tpu.memory_space<vmem>>, %arg15: memref<1x128xf32, #tpu.memory_space<vmem>>) attributes {dimension_semantics = [#tpu.dimension_semantics<parallel>], iteration_bounds = array<i64: 1>, scalar_prefetch = 0 : i64, scratch_operands = 0 : i64, tpu.core_type = #tpu.core_type<tc>, window_params = [{transform_indices = @transform_0, window_bounds = array<i64: 32, 128>}, {pipeline_mode = #tpu.pipeline_mode<synchronous>, transform_indices = @transform_1, window_bounds = array<i64: 4, 32>}, {pipeline_mode = #tpu.pipeline_mode<synchronous>, transform_indices = @transform_2, window_bounds = array<i64: 256, 32>}, {pipeline_mode = #tpu.pipeline_mode<synchronous>, transform_indices = @transform_3, window_bounds = array<i64: 256, 1>}, {pipeline_mode = #tpu.pipeline_mode<synchronous>, transform_indices = @transform_4, window_bounds = array<i64: 256, 256>}, {pipeline_mode = #tpu.pipeline_mode<synchronous>, transform_indices = @transform_5, window_bounds = array<i64: 256, 1>}, {pipeline_mode = #tpu.pipeline_mode<synchronous>, transform_indices = @transform_6, window_bounds = array<i64: 32, 256>}, {pipeline_mode = #tpu.pipeline_mode<synchronous>, transform_indices = @transform_7, window_bounds = array<i64: 32, 1>}, {pipeline_mode = #tpu.pipeline_mode<synchronous>, transform_indices = @transform_8, window_bounds = array<i64: 1, 32>}, {pipeline_mode = #tpu.pipeline_mode<synchronous>, transform_indices = @transform_9, window_bounds = array<i64: 1, 1>}, {pipeline_mode = #tpu.pipeline_mode<synchronous>, transform_indices = @transform_10, window_bounds = array<i64: 16, 1>}, {pipeline_mode = #tpu.pipeline_mode<synchronous>, transform_indices = @transform_11, window_bounds = array<i64: 16, 1>}, {pipeline_mode = #tpu.pipeline_mode<synchronous>, transform_indices = @transform_12, window_bounds = array<i64: 1, 16>}, {pipeline_mode = #tpu.pipeline_mode<synchronous>, transform_indices = @transform_13, window_bounds = array<i64: 1, 1>}, {transform_indices = @transform_14, window_bounds = array<i64: 1, 128>}]} {
    %c0 = arith.constant 0 : index
    %c0_0 = arith.constant 0 : index
    %0 = vector.load %arg1[%c0, %c0_0] : memref<32x128xf32, #tpu.memory_space<vmem>>, vector<32x128xf32>
    %c0_1 = arith.constant 0 : index
    %c0_2 = arith.constant 0 : index
    %1 = vector.load %arg3[%c0_1, %c0_2] : memref<256x32xf32, #tpu.memory_space<vmem>>, vector<256x32xf32>
    %c0_3 = arith.constant 0 : index
    %c0_4 = arith.constant 0 : index
    %2 = vector.load %arg4[%c0_3, %c0_4] : memref<256x1xf32, #tpu.memory_space<vmem>>, vector<256x1xf32>
    %cst = arith.constant dense<0.000000e+00> : vector<256x128xf32>
    %3 = tpu.matmul %1, %0, %cst {dimension_numbers = #tpu.dot_dimension_numbers<[1], [0], [0], [1], [0, 0, 1, 1], [], []>} : vector<256x32xf32>, vector<32x128xf32>, vector<256x128xf32> -> vector<256x128xf32>
    %4 = vector.broadcast %2 : vector<256x1xf32> to vector<256x128xf32>
    %5 = arith.addf %3, %4 : vector<256x128xf32>
    %cst_5 = arith.constant 0.000000e+00 : f32
    %6 = vector.broadcast %cst_5 : f32 to vector<256x128xf32>
    %7 = arith.maximumf %5, %6 : vector<256x128xf32>
    %c0_6 = arith.constant 0 : index
    %c0_7 = arith.constant 0 : index
    %8 = vector.load %arg5[%c0_6, %c0_7] : memref<256x256xf32, #tpu.memory_space<vmem>>, vector<256x256xf32>
    %c0_8 = arith.constant 0 : index
    %c0_9 = arith.constant 0 : index
    %9 = vector.load %arg6[%c0_8, %c0_9] : memref<256x1xf32, #tpu.memory_space<vmem>>, vector<256x1xf32>
    %cst_10 = arith.constant dense<0.000000e+00> : vector<256x128xf32>
    %10 = tpu.matmul %8, %7, %cst_10 {dimension_numbers = #tpu.dot_dimension_numbers<[1], [0], [0], [1], [0, 0, 1, 1], [], []>} : vector<256x256xf32>, vector<256x128xf32>, vector<256x128xf32> -> vector<256x128xf32>
    %11 = vector.broadcast %9 : vector<256x1xf32> to vector<256x128xf32>
    %12 = arith.addf %10, %11 : vector<256x128xf32>
    %cst_11 = arith.constant 0.000000e+00 : f32
    %13 = vector.broadcast %cst_11 : f32 to vector<256x128xf32>
    %14 = arith.maximumf %12, %13 : vector<256x128xf32>
    %c0_12 = arith.constant 0 : index
    %c0_13 = arith.constant 0 : index
    %15 = vector.load %arg7[%c0_12, %c0_13] : memref<32x256xf32, #tpu.memory_space<vmem>>, vector<32x256xf32>
    %c0_14 = arith.constant 0 : index
    %c0_15 = arith.constant 0 : index
    %16 = vector.load %arg8[%c0_14, %c0_15] : memref<32x1xf32, #tpu.memory_space<vmem>>, vector<32x1xf32>
    %cst_16 = arith.constant dense<0.000000e+00> : vector<32x128xf32>
    %17 = tpu.matmul %15, %14, %cst_16 {dimension_numbers = #tpu.dot_dimension_numbers<[1], [0], [0], [1], [0, 0, 1, 1], [], []>} : vector<32x256xf32>, vector<256x128xf32>, vector<32x128xf32> -> vector<32x128xf32>
    %18 = vector.broadcast %16 : vector<32x1xf32> to vector<32x128xf32>
    %19 = arith.addf %17, %18 : vector<32x128xf32>
    %cst_17 = arith.constant 0.000000e+00 : f32
    %20 = vector.broadcast %cst_17 : f32 to vector<32x128xf32>
    %21 = arith.maximumf %19, %20 : vector<32x128xf32>
    %c0_18 = arith.constant 0 : index
    %c0_19 = arith.constant 0 : index
    %22 = vector.load %arg9[%c0_18, %c0_19] : memref<1x32xf32, #tpu.memory_space<vmem>>, vector<1x32xf32>
    %c0_20 = arith.constant 0 : index
    %c0_21 = arith.constant 0 : index
    %23 = vector.load %arg10[%c0_20, %c0_21] : memref<1x1xf32, #tpu.memory_space<vmem>>, vector<1x1xf32>
    %cst_22 = arith.constant dense<0.000000e+00> : vector<1x128xf32>
    %24 = tpu.matmul %22, %21, %cst_22 {dimension_numbers = #tpu.dot_dimension_numbers<[1], [0], [0], [1], [0, 0, 1, 1], [], []>} : vector<1x32xf32>, vector<32x128xf32>, vector<1x128xf32> -> vector<1x128xf32>
    %25 = vector.broadcast %23 : vector<1x1xf32> to vector<1x128xf32>
    %26 = arith.addf %24, %25 : vector<1x128xf32>
    %27 = arith.negf %26 : vector<1x128xf32>
    %28 = math.exp %27 : vector<1x128xf32>
    %cst_23 = arith.constant 1.000000e+00 : f32
    %29 = vector.broadcast %cst_23 : f32 to vector<1x128xf32>
    %30 = arith.addf %29, %28 : vector<1x128xf32>
    %31 = arith.divf %29, %30 : vector<1x128xf32>
    %c0_24 = arith.constant 0 : index
    %c0_25 = arith.constant 0 : index
    %32 = vector.load %arg2[%c0_24, %c0_25] : memref<4x32xf32, #tpu.memory_space<vmem>>, vector<4x32xf32>
    %cst_26 = arith.constant dense<0.000000e+00> : vector<4x128xf32>
    %33 = tpu.matmul %32, %0, %cst_26 {dimension_numbers = #tpu.dot_dimension_numbers<[1], [0], [0], [1], [0, 0, 1, 1], [], []>} : vector<4x32xf32>, vector<32x128xf32>, vector<4x128xf32> -> vector<4x128xf32>
    %34 = arith.mulf %33, %33 : vector<4x128xf32>
    %35 = vector.extract_strided_slice %34 {offsets = [0, 0], sizes = [1, 128], strides = [1, 1]} : vector<4x128xf32> to vector<1x128xf32>
    %cst_27 = arith.constant 2.000000e+00 : f32
    %36 = vector.broadcast %cst_27 : f32 to vector<1x128xf32>
    %37 = arith.mulf %36, %35 : vector<1x128xf32>
    %cst_28 = arith.constant dense<0.000000e+00> : vector<128xf32>
    %38 = vector.multi_reduction <add>, %34, %cst_28 [0] : vector<4x128xf32> to vector<128xf32>
    %39 = vector.shape_cast %38 : vector<128xf32> to vector<1x128xf32>
    %40 = arith.subf %37, %39 : vector<1x128xf32>
    %c0_29 = arith.constant 0 : index
    %c0_30 = arith.constant 0 : index
    %41 = vector.load %arg11[%c0_29, %c0_30] : memref<16x1xf32, #tpu.memory_space<vmem>>, vector<16x1xf32>
    %c0_31 = arith.constant 0 : index
    %c0_32 = arith.constant 0 : index
    %42 = vector.load %arg12[%c0_31, %c0_32] : memref<16x1xf32, #tpu.memory_space<vmem>>, vector<16x1xf32>
    %43 = vector.broadcast %41 : vector<16x1xf32> to vector<16x128xf32>
    %44 = vector.broadcast %40 : vector<1x128xf32> to vector<16x128xf32>
    %45 = arith.mulf %43, %44 : vector<16x128xf32>
    %46 = vector.broadcast %42 : vector<16x1xf32> to vector<16x128xf32>
    %47 = arith.addf %45, %46 : vector<16x128xf32>
    %cst_33 = arith.constant 0.000000e+00 : f32
    %48 = vector.broadcast %cst_33 : f32 to vector<16x128xf32>
    %49 = arith.maximumf %47, %48 : vector<16x128xf32>
    %c0_34 = arith.constant 0 : index
    %c0_35 = arith.constant 0 : index
    %50 = vector.load %arg13[%c0_34, %c0_35] : memref<1x16xf32, #tpu.memory_space<vmem>>, vector<1x16xf32>
    %c0_36 = arith.constant 0 : index
    %c0_37 = arith.constant 0 : index
    %51 = vector.load %arg14[%c0_36, %c0_37] : memref<1x1xf32, #tpu.memory_space<vmem>>, vector<1x1xf32>
    %cst_38 = arith.constant dense<0.000000e+00> : vector<1x128xf32>
    %52 = tpu.matmul %50, %49, %cst_38 {dimension_numbers = #tpu.dot_dimension_numbers<[1], [0], [0], [1], [0, 0, 1, 1], [], []>} : vector<1x16xf32>, vector<16x128xf32>, vector<1x128xf32> -> vector<1x128xf32>
    %53 = vector.broadcast %51 : vector<1x1xf32> to vector<1x128xf32>
    %54 = arith.addf %52, %53 : vector<1x128xf32>
    %55 = arith.negf %54 : vector<1x128xf32>
    %56 = math.exp %55 : vector<1x128xf32>
    %cst_39 = arith.constant 1.000000e+00 : f32
    %57 = vector.broadcast %cst_39 : f32 to vector<1x128xf32>
    %58 = arith.addf %57, %56 : vector<1x128xf32>
    %59 = arith.divf %57, %58 : vector<1x128xf32>
    %cst_40 = arith.constant 0.699999988 : f32
    %60 = vector.broadcast %cst_40 : f32 to vector<1x128xf32>
    %61 = arith.mulf %60, %31 : vector<1x128xf32>
    %cst_41 = arith.constant 3.000000e-01 : f32
    %62 = vector.broadcast %cst_41 : f32 to vector<1x128xf32>
    %63 = arith.mulf %62, %59 : vector<1x128xf32>
    %64 = arith.addf %61, %63 : vector<1x128xf32>
    %c0_42 = arith.constant 0 : index
    %c0_43 = arith.constant 0 : index
    %65 = vector.load %arg15[%c0_42, %c0_43] : memref<1x128xf32, #tpu.memory_space<vmem>>, vector<1x128xf32>
    tpu.vector_store %arg15[%c0_42, %c0_43], %64 {strides = array<i32>} : memref<1x128xf32, #tpu.memory_space<vmem>>, vector<1x128xf32>,
    return
  }
  func.func @transform_0(%arg0: i32) -> (i32, i32) {
    %c0_i32 = arith.constant 0 : i32
    %c0_i32_0 = arith.constant 0 : i32
    return %c0_i32, %arg0 : i32, i32
  }
  func.func @transform_1(%arg0: i32) -> (i32, i32) {
    %c0_i32 = arith.constant 0 : i32
    %c0_i32_0 = arith.constant 0 : i32
    %c0_i32_1 = arith.constant 0 : i32
    return %c0_i32, %c0_i32_0 : i32, i32
  }
  func.func @transform_2(%arg0: i32) -> (i32, i32) {
    %c0_i32 = arith.constant 0 : i32
    %c0_i32_0 = arith.constant 0 : i32
    %c0_i32_1 = arith.constant 0 : i32
    return %c0_i32, %c0_i32_0 : i32, i32
  }
  func.func @transform_3(%arg0: i32) -> (i32, i32) {
    %c0_i32 = arith.constant 0 : i32
    %c0_i32_0 = arith.constant 0 : i32
    %c0_i32_1 = arith.constant 0 : i32
    return %c0_i32, %c0_i32_0 : i32, i32
  }
  func.func @transform_4(%arg0: i32) -> (i32, i32) {
    %c0_i32 = arith.constant 0 : i32
    %c0_i32_0 = arith.constant 0 : i32
    %c0_i32_1 = arith.constant 0 : i32
    return %c0_i32, %c0_i32_0 : i32, i32
  }
  func.func @transform_5(%arg0: i32) -> (i32, i32) {
    %c0_i32 = arith.constant 0 : i32
    %c0_i32_0 = arith.constant 0 : i32
    %c0_i32_1 = arith.constant 0 : i32
    return %c0_i32, %c0_i32_0 : i32, i32
  }
  func.func @transform_6(%arg0: i32) -> (i32, i32) {
    %c0_i32 = arith.constant 0 : i32
    %c0_i32_0 = arith.constant 0 : i32
    %c0_i32_1 = arith.constant 0 : i32
    return %c0_i32, %c0_i32_0 : i32, i32
  }
  func.func @transform_7(%arg0: i32) -> (i32, i32) {
    %c0_i32 = arith.constant 0 : i32
    %c0_i32_0 = arith.constant 0 : i32
    %c0_i32_1 = arith.constant 0 : i32
    return %c0_i32, %c0_i32_0 : i32, i32
  }
  func.func @transform_8(%arg0: i32) -> (i32, i32) {
    %c0_i32 = arith.constant 0 : i32
    %c0_i32_0 = arith.constant 0 : i32
    %c0_i32_1 = arith.constant 0 : i32
    return %c0_i32, %c0_i32_0 : i32, i32
  }
  func.func @transform_9(%arg0: i32) -> (i32, i32) {
    %c0_i32 = arith.constant 0 : i32
    %c0_i32_0 = arith.constant 0 : i32
    %c0_i32_1 = arith.constant 0 : i32
    return %c0_i32, %c0_i32_0 : i32, i32
  }
  func.func @transform_10(%arg0: i32) -> (i32, i32) {
    %c0_i32 = arith.constant 0 : i32
    %c0_i32_0 = arith.constant 0 : i32
    %c0_i32_1 = arith.constant 0 : i32
    return %c0_i32, %c0_i32_0 : i32, i32
  }
  func.func @transform_11(%arg0: i32) -> (i32, i32) {
    %c0_i32 = arith.constant 0 : i32
    %c0_i32_0 = arith.constant 0 : i32
    %c0_i32_1 = arith.constant 0 : i32
    return %c0_i32, %c0_i32_0 : i32, i32
  }
  func.func @transform_12(%arg0: i32) -> (i32, i32) {
    %c0_i32 = arith.constant 0 : i32
    %c0_i32_0 = arith.constant 0 : i32
    %c0_i32_1 = arith.constant 0 : i32
    return %c0_i32, %c0_i32_0 : i32, i32
  }
  func.func @transform_13(%arg0: i32) -> (i32, i32) {
    %c0_i32 = arith.constant 0 : i32
    %c0_i32_0 = arith.constant 0 : i32
    %c0_i32_1 = arith.constant 0 : i32
    return %c0_i32, %c0_i32_0 : i32, i32
  }
  func.func @transform_14(%arg0: i32) -> (i32, i32) {
    %c0_i32 = arith.constant 0 : i32
    %c0_i32_0 = arith.constant 0 : i32
    return %arg0, %c0_i32 : i32, i32
  }
}

</mosaic_0001>

<llo_original>
// kernel: tpu_custom_call.1
$region0: #{tpu_custom_call.1}
  #allocation0 [shape = 'u32[]', space=smem, size = 0x4, offset = 0x4, fixed_abs, tag = 'smem constant byte address 0x4 - core index']
  #allocation1 [shape = 'u32[144,128]{1,0:T(1,128)}', space=vmem, size = 0x12000, scoped, tag = 'internal scratch']
  #allocation2 [shape = 'f32[1,1]{1,0:T(1,128)S(1)}', space=vmem, size = 0x200, scoped, tag = 'scoped memory for tpu_custom_call.1']
  #allocation3 [shape = 'f32[1,1]{1,0:T(1,128)S(1)}', space=vmem, size = 0x200, scoped, tag = 'scoped memory for tpu_custom_call.1']
  %s0 = inlined_call_operand.vmem [shape: f32[32,128], index: 0, kind: input, shape index: {}]
  %s1 = inlined_call_operand.vmem [shape: f32[4,32], index: 1, kind: input, shape index: {}]
  %s2 = inlined_call_operand.vmem [shape: f32[256,32], index: 2, kind: input, shape index: {}]
  %s3 = inlined_call_operand.vmem [shape: f32[256,1], index: 3, kind: input, shape index: {}]
  %s4 = inlined_call_operand.vmem [shape: f32[256,256], index: 4, kind: input, shape index: {}]
  %s5 = inlined_call_operand.vmem [shape: f32[256,1], index: 5, kind: input, shape index: {}]
  %s6 = inlined_call_operand.vmem [shape: f32[32,256], index: 6, kind: input, shape index: {}]
  %s7 = inlined_call_operand.vmem [shape: f32[32,1], index: 7, kind: input, shape index: {}]
  %s8 = inlined_call_operand.vmem [shape: f32[1,32], index: 8, kind: input, shape index: {}]
  %s9 = inlined_call_operand.<no memory space> [shape: f32[1,1], index: 9, kind: input, shape index: {}]
  %s10 = inlined_call_operand.vmem [shape: f32[16,1], index: 10, kind: input, shape index: {}]
  %s11 = inlined_call_operand.vmem [shape: f32[16,1], index: 11, kind: input, shape index: {}]
  %s12 = inlined_call_operand.vmem [shape: f32[1,16], index: 12, kind: input, shape index: {}]
  %s13 = inlined_call_operand.<no memory space> [shape: f32[1,1], index: 13, kind: input, shape index: {}]
  %s14 = inlined_call_operand.hbm [shape: f32[1,128], index: 14, kind: output, shape index: {}]
  %s15 = sld [smem:[#allocation0]]
  $region66: #{tpu_custom_call.1} parent=0
    _
  %s17 = ssub.s32 1, %s15
  %s18 = scalar_select 0, %s17, %s15
  %v19 = vstv %s9
  %20 = vst [vmem:[#allocation2] sm:$0x1] %v19
  %v21 = vstv %s13
  %22 = vst [vmem:[#allocation3] sm:$0x1] %v21
  $region1: #{tpu_custom_call.1} parent=0
    #allocation4 [shape = 'u8[512]{0}', space=vmem, size = 0x400, scoped, tag = 'output window, operand 0, single buffered']
    #allocation5 [shape = 's32[1]{0}', space=sflag, size = 0x4, scoped, tag = 'scoped memory for tpu_custom_call.1']
    %23 = vsyncpa [#allocation5], 0
    // Predicated region
    $region2: #{tpu_custom_call.1} parent=1 // pred_check
      _
    $region3: #{tpu_custom_call.1} parent=1 // pred_check_branch
      %25 = sbr.rel (0) target = $region5
    $region4: #{tpu_custom_call.1} parent=1 // pred_region
      _
    $region5: #{tpu_custom_call.1} parent=1 // pred_fallthru
      _
    // Predicated region
    $region6: #{tpu_custom_call.1} parent=1 // pred_check
      _
    $region7: #{tpu_custom_call.1} parent=1 // pred_check_branch
      %27 = sbr.rel (0) target = $region9
    $region8: #{tpu_custom_call.1} parent=1 // pred_region
      _
    $region9: #{tpu_custom_call.1} parent=1 // pred_fallthru
      _
    // Predicated region
    $region10: #{tpu_custom_call.1} parent=1 // pred_check
      _
    $region11: #{tpu_custom_call.1} parent=1 // pred_check_branch
      %29 = sbr.rel (0) target = $region13
    $region12: #{tpu_custom_call.1} parent=1 // pred_region
      _
    $region13: #{tpu_custom_call.1} parent=1 // pred_fallthru
      _
    // Predicated region
    $region14: #{tpu_custom_call.1} parent=1 // pred_check
      _
    $region15: #{tpu_custom_call.1} parent=1 // pred_check_branch
      %31 = sbr.rel (0) target = $region17
    $region16: #{tpu_custom_call.1} parent=1 // pred_region
      _
    $region17: #{tpu_custom_call.1} parent=1 // pred_fallthru
      _
    // Predicated region
    $region18: #{tpu_custom_call.1} parent=1 // pred_check
      _
    $region19: #{tpu_custom_call.1} parent=1 // pred_check_branch
      %33 = sbr.rel (0) target = $region21
    $region20: #{tpu_custom_call.1} parent=1 // pred_region
      _
    $region21: #{tpu_custom_call.1} parent=1 // pred_fallthru
      _
    // Predicated region
    $region22: #{tpu_custom_call.1} parent=1 // pred_check
      _
    $region23: #{tpu_custom_call.1} parent=1 // pred_check_branch
      %35 = sbr.rel (0) target = $region25
    $region24: #{tpu_custom_call.1} parent=1 // pred_region
      _
    $region25: #{tpu_custom_call.1} parent=1 // pred_fallthru
      _
    // Predicated region
    $region26: #{tpu_custom_call.1} parent=1 // pred_check
      _
    $region27: #{tpu_custom_call.1} parent=1 // pred_check_branch
      %37 = sbr.rel (0) target = $region29
    $region28: #{tpu_custom_call.1} parent=1 // pred_region
      _
    $region29: #{tpu_custom_call.1} parent=1 // pred_fallthru
      _
    // Predicated region
    $region30: #{tpu_custom_call.1} parent=1 // pred_check
      _
    $region31: #{tpu_custom_call.1} parent=1 // pred_check_branch
      %39 = sbr.rel (0) target = $region33
    $region32: #{tpu_custom_call.1} parent=1 // pred_region
      _
    $region33: #{tpu_custom_call.1} parent=1 // pred_fallthru
      _
    // Predicated region
    $region34: #{tpu_custom_call.1} parent=1 // pred_check
      _
    $region35: #{tpu_custom_call.1} parent=1 // pred_check_branch
      %41 = sbr.rel (0) target = $region37
    $region36: #{tpu_custom_call.1} parent=1 // pred_region
      _
    $region37: #{tpu_custom_call.1} parent=1 // pred_fallthru
      _
    // Predicated region
    $region38: #{tpu_custom_call.1} parent=1 // pred_check
      _
    $region39: #{tpu_custom_call.1} parent=1 // pred_check_branch
      %43 = sbr.rel (0) target = $region41
    $region40: #{tpu_custom_call.1} parent=1 // pred_region
      _
    $region41: #{tpu_custom_call.1} parent=1 // pred_fallthru
      _
    // Predicated region
    $region42: #{tpu_custom_call.1} parent=1 // pred_check
      _
    $region43: #{tpu_custom_call.1} parent=1 // pred_check_branch
      %45 = sbr.rel (0) target = $region45
    $region44: #{tpu_custom_call.1} parent=1 // pred_region
      _
    $region45: #{tpu_custom_call.1} parent=1 // pred_fallthru
      _
    // Predicated region
    $region46: #{tpu_custom_call.1} parent=1 // pred_check
      _
    $region47: #{tpu_custom_call.1} parent=1 // pred_check_branch
      %47 = sbr.rel (0) target = $region49
    $region48: #{tpu_custom_call.1} parent=1 // pred_region
      _
    $region49: #{tpu_custom_call.1} parent=1 // pred_fallthru
      _
    // Predicated region
    $region50: #{tpu_custom_call.1} parent=1 // pred_check
      _
    $region51: #{tpu_custom_call.1} parent=1 // pred_check_branch
      %49 = sbr.rel (0) target = $region53
    $region52: #{tpu_custom_call.1} parent=1 // pred_region
      _
    $region53: #{tpu_custom_call.1} parent=1 // pred_fallthru
      _
    // Predicated region
    $region54: #{tpu_custom_call.1} parent=1 // pred_check
      _
    $region55: #{tpu_custom_call.1} parent=1 // pred_check_branch
      %51 = sbr.rel (0) target = $region57
    $region56: #{tpu_custom_call.1} parent=1 // pred_region
      _
    $region57: #{tpu_custom_call.1} parent=1 // pred_fallthru
      _
    %v52 = vld [vmem:[%s0] sm:$0xff]
    %v53 = vld [vmem:[%s0 + $0x8] sm:$0xff]
    %v54 = vld [vmem:[%s0 + $0x10] sm:$0xff]
    %v55 = vld [vmem:[%s0 + $0x18] sm:$0xff]
    %v56 = vld [vmem:[%s2] sm:$0xff]
    %v57 = vld [vmem:[%s2 + $0x8] sm:$0xff]
    %v58 = vld [vmem:[%s2 + $0x10] sm:$0xff]
    %v59 = vld [vmem:[%s2 + $0x18] sm:$0xff]
    %v60 = vld [vmem:[%s2 + $0x20] sm:$0xff]
    %v61 = vld [vmem:[%s2 + $0x28] sm:$0xff]
    %v62 = vld [vmem:[%s2 + $0x30] sm:$0xff]
    %v63 = vld [vmem:[%s2 + $0x38] sm:$0xff]
    %v64 = vld [vmem:[%s2 + $0x40] sm:$0xff]
    %v65 = vld [vmem:[%s2 + $0x48] sm:$0xff]
    %v66 = vld [vmem:[%s2 + $0x50] sm:$0xff]
    %v67 = vld [vmem:[%s2 + $0x58] sm:$0xff]
    %v68 = vld [vmem:[%s2 + $0x60] sm:$0xff]
    %v69 = vld [vmem:[%s2 + $0x68] sm:$0xff]
    %v70 = vld [vmem:[%s2 + $0x70] sm:$0xff]
    %v71 = vld [vmem:[%s2 + $0x78] sm:$0xff]
    %v72 = vld [vmem:[%s2 + $0x80] sm:$0xff]
    %v73 = vld [vmem:[%s2 + $0x88] sm:$0xff]
    %v74 = vld [vmem:[%s2 + $0x90] sm:$0xff]
    %v75 = vld [vmem:[%s2 + $0x98] sm:$0xff]
    %v76 = vld [vmem:[%s2 + $0xa0] sm:$0xff]
    %v77 = vld [vmem:[%s2 + $0xa8] sm:$0xff]
    %v78 = vld [vmem:[%s2 + $0xb0] sm:$0xff]
    %v79 = vld [vmem:[%s2 + $0xb8] sm:$0xff]
    %v80 = vld [vmem:[%s2 + $0xc0] sm:$0xff]
    %v81 = vld [vmem:[%s2 + $0xc8] sm:$0xff]
    %v82 = vld [vmem:[%s2 + $0xd0] sm:$0xff]
    %v83 = vld [vmem:[%s2 + $0xd8] sm:$0xff]
    %v84 = vld [vmem:[%s2 + $0xe0] sm:$0xff]
    %v85 = vld [vmem:[%s2 + $0xe8] sm:$0xff]
    %v86 = vld [vmem:[%s2 + $0xf0] sm:$0xff]
    %v87 = vld [vmem:[%s2 + $0xf8] sm:$0xff]
    %v88 = vld [vmem:[%s3] sm:$0xff]
    %v89 = vld [vmem:[%s3 + $0x8] sm:$0xff]
    %v90 = vld [vmem:[%s3 + $0x10] sm:$0xff]
    %v91 = vld [vmem:[%s3 + $0x18] sm:$0xff]
    %v92 = vld [vmem:[%s3 + $0x20] sm:$0xff]
    %v93 = vld [vmem:[%s3 + $0x28] sm:$0xff]
    %v94 = vld [vmem:[%s3 + $0x30] sm:$0xff]
    %v95 = vld [vmem:[%s3 + $0x38] sm:$0xff]
    %v96 = vld [vmem:[%s3 + $0x40] sm:$0xff]
    %v97 = vld [vmem:[%s3 + $0x48] sm:$0xff]
    %v98 = vld [vmem:[%s3 + $0x50] sm:$0xff]
    %v99 = vld [vmem:[%s3 + $0x58] sm:$0xff]
    %v100 = vld [vmem:[%s3 + $0x60] sm:$0xff]
    %v101 = vld [vmem:[%s3 + $0x68] sm:$0xff]
    %v102 = vld [vmem:[%s3 + $0x70] sm:$0xff]
    %v103 = vld [vmem:[%s3 + $0x78] sm:$0xff]
    %v104 = vld [vmem:[%s3 + $0x80] sm:$0xff]
    %v105 = vld [vmem:[%s3 + $0x88] sm:$0xff]
    %v106 = vld [vmem:[%s3 + $0x90] sm:$0xff]
    %v107 = vld [vmem:[%s3 + $0x98] sm:$0xff]
    %v108 = vld [vmem:[%s3 + $0xa0] sm:$0xff]
    %v109 = vld [vmem:[%s3 + $0xa8] sm:$0xff]
    %v110 = vld [vmem:[%s3 + $0xb0] sm:$0xff]
    %v111 = vld [vmem:[%s3 + $0xb8] sm:$0xff]
    %v112 = vld [vmem:[%s3 + $0xc0] sm:$0xff]
    %v113 = vld [vmem:[%s3 + $0xc8] sm:$0xff]
    %v114 = vld [vmem:[%s3 + $0xd0] sm:$0xff]
    %v115 = vld [vmem:[%s3 + $0xd8] sm:$0xff]
    %v116 = vld [vmem:[%s3 + $0xe0] sm:$0xff]
    %v117 = vld [vmem:[%s3 + $0xe8] sm:$0xff]
    %v118 = vld [vmem:[%s3 + $0xf0] sm:$0xff]
    %v119 = vld [vmem:[%s3 + $0xf8] sm:$0xff]
    %121 = vset.pattern.permute.xlu0 0
    %122 = vperm.xlu0 %121, %v88
    %v123 = vpop.permute.xlu0 %122
    %126 = vset.pattern.permute.xlu0 0
    %127 = vperm.xlu0 %126, %v89
    %v128 = vpop.permute.xlu0 %127
    %131 = vset.pattern.permute.xlu0 0
    %132 = vperm.xlu0 %131, %v90
    %v133 = vpop.permute.xlu0 %132
    %136 = vset.pattern.permute.xlu0 0
    %137 = vperm.xlu0 %136, %v91
    %v138 = vpop.permute.xlu0 %137
    %141 = vset.pattern.permute.xlu0 0
    %142 = vperm.xlu0 %141, %v92
    %v143 = vpop.permute.xlu0 %142
    %146 = vset.pattern.permute.xlu0 0
    %147 = vperm.xlu0 %146, %v93
    %v148 = vpop.permute.xlu0 %147
    %151 = vset.pattern.permute.xlu0 0
    %152 = vperm.xlu0 %151, %v94
    %v153 = vpop.permute.xlu0 %152
    %156 = vset.pattern.permute.xlu0 0
    %157 = vperm.xlu0 %156, %v95
    %v158 = vpop.permute.xlu0 %157
    %161 = vset.pattern.permute.xlu0 0
    %162 = vperm.xlu0 %161, %v96
    %v163 = vpop.permute.xlu0 %162
    %166 = vset.pattern.permute.xlu0 0
    %167 = vperm.xlu0 %166, %v97
    %v168 = vpop.permute.xlu0 %167
    %171 = vset.pattern.permute.xlu0 0
    %172 = vperm.xlu0 %171, %v98
    %v173 = vpop.permute.xlu0 %172
    %176 = vset.pattern.permute.xlu0 0
    %177 = vperm.xlu0 %176, %v99
    %v178 = vpop.permute.xlu0 %177
    %181 = vset.pattern.permute.xlu0 0
    %182 = vperm.xlu0 %181, %v100
    %v183 = vpop.permute.xlu0 %182
    %186 = vset.pattern.permute.xlu0 0
    %187 = vperm.xlu0 %186, %v101
    %v188 = vpop.permute.xlu0 %187
    %191 = vset.pattern.permute.xlu0 0
    %192 = vperm.xlu0 %191, %v102
    %v193 = vpop.permute.xlu0 %192
    %196 = vset.pattern.permute.xlu0 0
    %197 = vperm.xlu0 %196, %v103
    %v198 = vpop.permute.xlu0 %197
    %201 = vset.pattern.permute.xlu0 0
    %202 = vperm.xlu0 %201, %v104
    %v203 = vpop.permute.xlu0 %202
    %206 = vset.pattern.permute.xlu0 0
    %207 = vperm.xlu0 %206, %v105
    %v208 = vpop.permute.xlu0 %207
    %211 = vset.pattern.permute.xlu0 0
    %212 = vperm.xlu0 %211, %v106
    %v213 = vpop.permute.xlu0 %212
    %216 = vset.pattern.permute.xlu0 0
    %217 = vperm.xlu0 %216, %v107
    %v218 = vpop.permute.xlu0 %217
    %221 = vset.pattern.permute.xlu0 0
    %222 = vperm.xlu0 %221, %v108
    %v223 = vpop.permute.xlu0 %222
    %226 = vset.pattern.permute.xlu0 0
    %227 = vperm.xlu0 %226, %v109
    %v228 = vpop.permute.xlu0 %227
    %231 = vset.pattern.permute.xlu0 0
    %232 = vperm.xlu0 %231, %v110
    %v233 = vpop.permute.xlu0 %232
    %236 = vset.pattern.permute.xlu0 0
    %237 = vperm.xlu0 %236, %v111
    %v238 = vpop.permute.xlu0 %237
    %241 = vset.pattern.permute.xlu0 0
    %242 = vperm.xlu0 %241, %v112
    %v243 = vpop.permute.xlu0 %242
    %246 = vset.pattern.permute.xlu0 0
    %247 = vperm.xlu0 %246, %v113
    %v248 = vpop.permute.xlu0 %247
    %251 = vset.pattern.permute.xlu0 0
    %252 = vperm.xlu0 %251, %v114
    %v253 = vpop.permute.xlu0 %252
    %256 = vset.pattern.permute.xlu0 0
    %257 = vperm.xlu0 %256, %v115
    %v258 = vpop.permute.xlu0 %257
    %261 = vset.pattern.permute.xlu0 0
    %262 = vperm.xlu0 %261, %v116
    %v263 = vpop.permute.xlu0 %262
    %266 = vset.pattern.permute.xlu0 0
    %267 = vperm.xlu0 %266, %v117
    %v268 = vpop.permute.xlu0 %267
    %271 = vset.pattern.permute.xlu0 0
    %272 = vperm.xlu0 %271, %v118
    %v273 = vpop.permute.xlu0 %272
    %276 = vset.pattern.permute.xlu0 0
    %277 = vperm.xlu0 %276, %v119
    %v278 = vpop.permute.xlu0 %277
    %vm280 = vcmask 261120
    %v282 = vsel %vm280, %v56, 0
    %v285 = vsel %vm280, %v57, 0
    %v288 = vsel %vm280, %v58, 0
    %v291 = vsel %vm280, %v59, 0
    %v294 = vsel %vm280, %v60, 0
    %v297 = vsel %vm280, %v61, 0
    %v300 = vsel %vm280, %v62, 0
    %v303 = vsel %vm280, %v63, 0
    %v306 = vsel %vm280, %v64, 0
    %v309 = vsel %vm280, %v65, 0
    %v312 = vsel %vm280, %v66, 0
    %v315 = vsel %vm280, %v67, 0
    %v318 = vsel %vm280, %v68, 0
    %v321 = vsel %vm280, %v69, 0
    %v324 = vsel %vm280, %v70, 0
    %v327 = vsel %vm280, %v71, 0
    %v330 = vsel %vm280, %v72, 0
    %v333 = vsel %vm280, %v73, 0
    %v336 = vsel %vm280, %v74, 0
    %v339 = vsel %vm280, %v75, 0
    %v342 = vsel %vm280, %v76, 0
    %v345 = vsel %vm280, %v77, 0
    %v348 = vsel %vm280, %v78, 0
    %v351 = vsel %vm280, %v79, 0
    %v354 = vsel %vm280, %v80, 0
    %v357 = vsel %vm280, %v81, 0
    %v360 = vsel %vm280, %v82, 0
    %v363 = vsel %vm280, %v83, 0
    %v366 = vsel %vm280, %v84, 0
    %v369 = vsel %vm280, %v85, 0
    %v372 = vsel %vm280, %v86, 0
    %v375 = vsel %vm280, %v87, 0
    %377 = vmatprep.subr.mxu0 0.0
    %378 = vmatpush1.msra.mxu0 %v52
    %379 = vmatprep.subr.mxu0 0.0
    %380 = vmatpush1.msra.mxu0 %v53
    %381 = vmatprep.subr.mxu0 0.0
    %382 = vmatpush1.msra.mxu0 %v54
    %383 = vmatprep.subr.mxu0 0.0
    %384 = vmatpush1.msra.mxu0 %v55
    %385 = vmatprep.subr.mxu0 0.0
    %386 = vmatpush1.msra.mxu0 0.0
    %387 = vmatprep.subr.mxu0 0.0
    %388 = vmatpush1.msra.mxu0 0.0
    %389 = vmatprep.subr.mxu0 0.0
    %390 = vmatpush1.msra.mxu0 0.0
    %391 = vmatprep.subr.mxu0 0.0
    %392 = vmatpush1.msra.mxu0 0.0
    %393 = vmatprep.subr.mxu0 0.0
    %394 = vmatpush1.msra.mxu0 0.0
    %395 = vmatprep.subr.mxu0 0.0
    %396 = vmatpush1.msra.mxu0 0.0
    %397 = vmatprep.subr.mxu0 0.0
    %398 = vmatpush1.msra.mxu0 0.0
    %399 = vmatprep.subr.mxu0 0.0
    %400 = vmatpush1.msra.mxu0 0.0
    %401 = vmatprep.subr.mxu0 0.0
    %402 = vmatpush1.msra.mxu0 0.0
    %403 = vmatprep.subr.mxu0 0.0
    %404 = vmatpush1.msra.mxu0 0.0
    %405 = vmatprep.subr.mxu0 0.0
    %406 = vmatpush1.msra.mxu0 0.0
    %407 = vmatprep.subr.mxu0 0.0
    %408 = vmatpush1.msra.mxu0 0.0
    %409 = vmatprep.subr.mxu0 0.0
    %410 = vmatpush1.msra.mxu0 0.0
    %411 = vmatprep.subr.mxu0 0.0
    %412 = vmatpush1.msra.mxu0 0.0
    %413 = vmatprep.subr.mxu0 0.0
    %414 = vmatpush1.msra.mxu0 0.0
    %415 = vmatprep.subr.mxu0 0.0
    %416 = vmatpush1.msra.mxu0 0.0
    %417 = vmatprep.subr.mxu0 0.0
    %418 = vmatpush1.msra.mxu0 0.0
    %419 = vmatprep.subr.mxu0 0.0
    %420 = vmatpush1.msra.mxu0 0.0
    %421 = vmatprep.subr.mxu0 0.0
    %422 = vmatpush1.msra.mxu0 0.0
    %423 = vmatprep.subr.mxu0 0.0
    %424 = vmatpush1.msra.mxu0 0.0
    %425 = vmatprep.subr.mxu0 0.0
    %426 = vmatpush1.msra.mxu0 0.0
    %427 = vmatprep.subr.mxu0 0.0
    %428 = vmatpush1.msra.mxu0 0.0
    %429 = vmatprep.subr.mxu0 0.0
    %430 = vmatpush1.msra.mxu0 0.0
    %431 = vmatprep.subr.mxu0 0.0
    %432 = vmatpush1.msra.mxu0 0.0
    %433 = vmatprep.subr.mxu0 0.0
    %434 = vmatpush1.msra.mxu0 0.0
    %435 = vmatprep.subr.mxu0 0.0
    %436 = vmatpush1.msra.mxu0 0.0
    %437 = vmatprep.subr.mxu0 0.0
    %438 = vmatpush1.msra.mxu0 0.0
    %439 = vmatprep.subr.mxu0 0.0
    %440 = vmatpush1.msra.mxu0 0.0
    %441 = vmatprep.mubr.f32.mxu0 0.0
    %442 = vmatmul.mubr.f32.gmra.mrb[0].mxu0 %v282
    %v443 = vpop.f32.mrb[0].mxu0
    %v444 = vadd.f32 %v123, %v443
    %v445 = vpop.f32.mrb[0].mxu0
    %446 = vmatprep.mubr.f32.mxu0 0.0
    %447 = vmatmul.mubr.f32.gmra.mrb[0].mxu0 %v285
    %v448 = vpop.f32.mrb[0].mxu0
    %v449 = vadd.f32 %v128, %v448
    %v450 = vpop.f32.mrb[0].mxu0
    %451 = vmatprep.mubr.f32.mxu0 0.0
    %452 = vmatmul.mubr.f32.gmra.mrb[0].mxu0 %v288
    %v453 = vpop.f32.mrb[0].mxu0
    %v454 = vadd.f32 %v133, %v453
    %v455 = vpop.f32.mrb[0].mxu0
    %456 = vmatprep.mubr.f32.mxu0 0.0
    %457 = vmatmul.mubr.f32.gmra.mrb[0].mxu0 %v291
    %v458 = vpop.f32.mrb[0].mxu0
    %v459 = vadd.f32 %v138, %v458
    %v460 = vpop.f32.mrb[0].mxu0
    %461 = vmatprep.mubr.f32.mxu0 0.0
    %462 = vmatmul.mubr.f32.gmra.mrb[0].mxu0 %v294
    %v463 = vpop.f32.mrb[0].mxu0
    %v464 = vadd.f32 %v143, %v463
    %v465 = vpop.f32.mrb[0].mxu0
    %466 = vmatprep.mubr.f32.mxu0 0.0
    %467 = vmatmul.mubr.f32.gmra.mrb[0].mxu0 %v297
    %v468 = vpop.f32.mrb[0].mxu0
    %v469 = vadd.f32 %v148, %v468
    %v470 = vpop.f32.mrb[0].mxu0
    %471 = vmatprep.mubr.f32.mxu0 0.0
    %472 = vmatmul.mubr.f32.gmra.mrb[0].mxu0 %v300
    %v473 = vpop.f32.mrb[0].mxu0
    %v474 = vadd.f32 %v153, %v473
    %v475 = vpop.f32.mrb[0].mxu0
    %476 = vmatprep.mubr.f32.mxu0 0.0
    %477 = vmatmul.mubr.f32.gmra.mrb[0].mxu0 %v303
    %v478 = vpop.f32.mrb[0].mxu0
    %v479 = vadd.f32 %v158, %v478
    %v480 = vpop.f32.mrb[0].mxu0
    %481 = vmatprep.mubr.f32.mxu0 0.0
    %482 = vmatmul.mubr.f32.gmra.mrb[0].mxu0 %v306
    %v483 = vpop.f32.mrb[0].mxu0
    %v484 = vadd.f32 %v163, %v483
    %v485 = vpop.f32.mrb[0].mxu0
    %486 = vmatprep.mubr.f32.mxu0 0.0
    %487 = vmatmul.mubr.f32.gmra.mrb[0].mxu0 %v309
    %v488 = vpop.f32.mrb[0].mxu0
    %v489 = vadd.f32 %v168, %v488
    %v490 = vpop.f32.mrb[0].mxu0
    %491 = vmatprep.mubr.f32.mxu0 0.0
    %492 = vmatmul.mubr.f32.gmra.mrb[0].mxu0 %v312
    %v493 = vpop.f32.mrb[0].mxu0
    %v494 = vadd.f32 %v173, %v493
    %v495 = vpop.f32.mrb[0].mxu0
    %496 = vmatprep.mubr.f32.mxu0 0.0
    %497 = vmatmul.mubr.f32.gmra.mrb[0].mxu0 %v315
    %v498 = vpop.f32.mrb[0].mxu0
    %v499 = vadd.f32 %v178, %v498
    %v500 = vpop.f32.mrb[0].mxu0
    %501 = vmatprep.mubr.f32.mxu0 0.0
    %502 = vmatmul.mubr.f32.gmra.mrb[0].mxu0 %v318
    %v503 = vpop.f32.mrb[0].mxu0
    %v504 = vadd.f32 %v183, %v503
    %v505 = vpop.f32.mrb[0].mxu0
    %506 = vmatprep.mubr.f32.mxu0 0.0
    %507 = vmatmul.mubr.f32.gmra.mrb[0].mxu0 %v321
    %v508 = vpop.f32.mrb[0].mxu0
    %v509 = vadd.f32 %v188, %v508
    %v510 = vpop.f32.mrb[0].mxu0
    %511 = vmatprep.mubr.f32.mxu0 0.0
    %512 = vmatmul.mubr.f32.gmra.mrb[0].mxu0 %v324
    %v513 = vpop.f32.mrb[0].mxu0
    %v514 = vadd.f32 %v193, %v513
    %v515 = vpop.f32.mrb[0].mxu0
    %516 = vmatprep.mubr.f32.mxu0 0.0
    %517 = vmatmul.mubr.f32.gmra.mrb[0].mxu0 %v327
    %v518 = vpop.f32.mrb[0].mxu0
    %v519 = vadd.f32 %v198, %v518
    %v520 = vpop.f32.mrb[0].mxu0
    %521 = vmatprep.mubr.f32.mxu0 0.0
    %522 = vmatmul.mubr.f32.gmra.mrb[0].mxu0 %v330
    %v523 = vpop.f32.mrb[0].mxu0
    %v524 = vadd.f32 %v203, %v523
    %v525 = vpop.f32.mrb[0].mxu0
    %526 = vmatprep.mubr.f32.mxu0 0.0
    %527 = vmatmul.mubr.f32.gmra.mrb[0].mxu0 %v333
    %v528 = vpop.f32.mrb[0].mxu0
    %v529 = vadd.f32 %v208, %v528
    %v530 = vpop.f32.mrb[0].mxu0
    %531 = vmatprep.mubr.f32.mxu0 0.0
    %532 = vmatmul.mubr.f32.gmra.mrb[0].mxu0 %v336
    %v533 = vpop.f32.mrb[0].mxu0
    %v534 = vadd.f32 %v213, %v533
    %v535 = vpop.f32.mrb[0].mxu0
    %536 = vmatprep.mubr.f32.mxu0 0.0
    %537 = vmatmul.mubr.f32.gmra.mrb[0].mxu0 %v339
    %v538 = vpop.f32.mrb[0].mxu0
    %v539 = vadd.f32 %v218, %v538
    %v540 = vpop.f32.mrb[0].mxu0
    %541 = vmatprep.mubr.f32.mxu0 0.0
    %542 = vmatmul.mubr.f32.gmra.mrb[0].mxu0 %v342
    %v543 = vpop.f32.mrb[0].mxu0
    %v544 = vadd.f32 %v223, %v543
    %v545 = vpop.f32.mrb[0].mxu0
    %546 = vmatprep.mubr.f32.mxu0 0.0
    %547 = vmatmul.mubr.f32.gmra.mrb[0].mxu0 %v345
    %v548 = vpop.f32.mrb[0].mxu0
    %v549 = vadd.f32 %v228, %v548
    %v550 = vpop.f32.mrb[0].mxu0
    %551 = vmatprep.mubr.f32.mxu0 0.0
    %552 = vmatmul.mubr.f32.gmra.mrb[0].mxu0 %v348
    %v553 = vpop.f32.mrb[0].mxu0
    %v554 = vadd.f32 %v233, %v553
    %v555 = vpop.f32.mrb[0].mxu0
    %556 = vmatprep.mubr.f32.mxu0 0.0
    %557 = vmatmul.mubr.f32.gmra.mrb[0].mxu0 %v351
    %v558 = vpop.f32.mrb[0].mxu0
    %v559 = vadd.f32 %v238, %v558
    %v560 = vpop.f32.mrb[0].mxu0
    %561 = vmatprep.mubr.f32.mxu0 0.0
    %562 = vmatmul.mubr.f32.gmra.mrb[0].mxu0 %v354
    %v563 = vpop.f32.mrb[0].mxu0
    %v564 = vadd.f32 %v243, %v563
    %v565 = vpop.f32.mrb[0].mxu0
    %566 = vmatprep.mubr.f32.mxu0 0.0
    %567 = vmatmul.mubr.f32.gmra.mrb[0].mxu0 %v357
    %v568 = vpop.f32.mrb[0].mxu0
    %v569 = vadd.f32 %v248, %v568
    %v570 = vpop.f32.mrb[0].mxu0
    %571 = vmatprep.mubr.f32.mxu0 0.0
    %572 = vmatmul.mubr.f32.gmra.mrb[0].mxu0 %v360
    %v573 = vpop.f32.mrb[0].mxu0
    %v574 = vadd.f32 %v253, %v573
    %v575 = vpop.f32.mrb[0].mxu0
    %576 = vmatprep.mubr.f32.mxu0 0.0
    %577 = vmatmul.mubr.f32.gmra.mrb[0].mxu0 %v363
    %v578 = vpop.f32.mrb[0].mxu0
    %v579 = vadd.f32 %v258, %v578
    %v580 = vpop.f32.mrb[0].mxu0
    %581 = vmatprep.mubr.f32.mxu0 0.0
    %582 = vmatmul.mubr.f32.gmra.mrb[0].mxu0 %v366
    %v583 = vpop.f32.mrb[0].mxu0
    %v584 = vadd.f32 %v263, %v583
    %v585 = vpop.f32.mrb[0].mxu0
    %586 = vmatprep.mubr.f32.mxu0 0.0
    %587 = vmatmul.mubr.f32.gmra.mrb[0].mxu0 %v369
    %v588 = vpop.f32.mrb[0].mxu0
    %v589 = vadd.f32 %v268, %v588
    %v590 = vpop.f32.mrb[0].mxu0
    %591 = vmatprep.mubr.f32.mxu0 0.0
    %592 = vmatmul.mubr.f32.gmra.mrb[0].mxu0 %v372
    %v593 = vpop.f32.mrb[0].mxu0
    %v594 = vadd.f32 %v273, %v593
    %v595 = vpop.f32.mrb[0].mxu0
    %596 = vmatprep.mubr.f32.mxu0 0.0
    %597 = vmatmul.mubr.f32.gmra.mrb[0].mxu0 %v375
    %v598 = vpop.f32.mrb[0].mxu0
    %v599 = vadd.f32 %v278, %v598
    %v600 = vpop.f32.mrb[0].mxu0
    %601 = vdwg.mxu0
    %v602 = vmax.f32 %v444, 0.0
    %v603 = vmax.f32 %v449, 0.0
    %v604 = vmax.f32 %v454, 0.0
    %v605 = vmax.f32 %v459, 0.0
    %v606 = vmax.f32 %v464, 0.0
    %v607 = vmax.f32 %v469, 0.0
    %v608 = vmax.f32 %v474, 0.0
    %v609 = vmax.f32 %v479, 0.0
    %v610 = vmax.f32 %v484, 0.0
    %v611 = vmax.f32 %v489, 0.0
    %v612 = vmax.f32 %v494, 0.0
    %v613 = vmax.f32 %v499, 0.0
    %v614 = vmax.f32 %v504, 0.0
    %v615 = vmax.f32 %v509, 0.0
    %v616 = vmax.f32 %v514, 0.0
    %v617 = vmax.f32 %v519, 0.0
    %v618 = vmax.f32 %v524, 0.0
    %v619 = vmax.f32 %v529, 0.0
    %v620 = vmax.f32 %v534, 0.0
    %v621 = vmax.f32 %v539, 0.0
    %v622 = vmax.f32 %v544, 0.0
    %v623 = vmax.f32 %v549, 0.0
    %v624 = vmax.f32 %v554, 0.0
    %v625 = vmax.f32 %v559, 0.0
    %v626 = vmax.f32 %v564, 0.0
    %v627 = vmax.f32 %v569, 0.0
    %v628 = vmax.f32 %v574, 0.0
    %v629 = vmax.f32 %v579, 0.0
    %v630 = vmax.f32 %v584, 0.0
    %v631 = vmax.f32 %v589, 0.0
    %v632 = vmax.f32 %v594, 0.0
    %v633 = vmax.f32 %v599, 0.0
    %v634 = vld [vmem:[%s4] sm:$0xff]
    %v635 = vld [vmem:[%s4 + $0x8] sm:$0xff]
    %v636 = vld [vmem:[%s4 + $0x10] sm:$0xff]
    %v637 = vld [vmem:[%s4 + $0x18] sm:$0xff]
    %v638 = vld [vmem:[%s4 + $0x20] sm:$0xff]
    %v639 = vld [vmem:[%s4 + $0x28] sm:$0xff]
    %v640 = vld [vmem:[%s4 + $0x30] sm:$0xff]
    %v641 = vld [vmem:[%s4 + $0x38] sm:$0xff]
    %v642 = vld [vmem:[%s4 + $0x40] sm:$0xff]
    %v643 = vld [vmem:[%s4 + $0x48] sm:$0xff]
    %v644 = vld [vmem:[%s4 + $0x50] sm:$0xff]
    %v645 = vld [vmem:[%s4 + $0x58] sm:$0xff]
    %v646 = vld [vmem:[%s4 + $0x60] sm:$0xff]
    %v647 = vld [vmem:[%s4 + $0x68] sm:$0xff]
    %v648 = vld [vmem:[%s4 + $0x70] sm:$0xff]
    %v649 = vld [vmem:[%s4 + $0x78] sm:$0xff]
    %v650 = vld [vmem:[%s4 + $0x80] sm:$0xff]
    %v651 = vld [vmem:[%s4 + $0x88] sm:$0xff]
    %v652 = vld [vmem:[%s4 + $0x90] sm:$0xff]
    %v653 = vld [vmem:[%s4 + $0x98] sm:$0xff]
    %v654 = vld [vmem:[%s4 + $0xa0] sm:$0xff]
    %v655 = vld [vmem:[%s4 + $0xa8] sm:$0xff]
    %v656 = vld [vmem:[%s4 + $0xb0] sm:$0xff]
    %v657 = vld [vmem:[%s4 + $0xb8] sm:$0xff]
    %v658 = vld [vmem:[%s4 + $0xc0] sm:$0xff]
    %v659 = vld [vmem:[%s4 + $0xc8] sm:$0xff]
    %v660 = vld [vmem:[%s4 + $0xd0] sm:$0xff]
    %v661 = vld [vmem:[%s4 + $0xd8] sm:$0xff]
    %v662 = vld [vmem:[%s4 + $0xe0] sm:$0xff]
    %v663 = vld [vmem:[%s4 + $0xe8] sm:$0xff]
    %v664 = vld [vmem:[%s4 + $0xf0] sm:$0xff]
    %v665 = vld [vmem:[%s4 + $0xf8] sm:$0xff]
    %v666 = vld [vmem:[%s4 + $0x100] sm:$0xff]
    %v667 = vld [vmem:[%s4 + $0x108] sm:$0xff]
    %v668 = vld [vmem:[%s4 + $0x110] sm:$0xff]
    %v669 = vld [vmem:[%s4 + $0x118] sm:$0xff]
    %v670 = vld [vmem:[%s4 + $0x120] sm:$0xff]
    %v671 = vld [vmem:[%s4 + $0x128] sm:$0xff]
    %v672 = vld [vmem:[%s4 + $0x130] sm:$0xff]
    %v673 = vld [vmem:[%s4 + $0x138] sm:$0xff]
    %v674 = vld [vmem:[%s4 + $0x140] sm:$0xff]
    %v675 = vld [vmem:[%s4 + $0x148] sm:$0xff]
    %v676 = vld [vmem:[%s4 + $0x150] sm:$0xff]
    %v677 = vld [vmem:[%s4 + $0x158] sm:$0xff]
    %v678 = vld [vmem:[%s4 + $0x160] sm:$0xff]
    %v679 = vld [vmem:[%s4 + $0x168] sm:$0xff]
    %v680 = vld [vmem:[%s4 + $0x170] sm:$0xff]
    %v681 = vld [vmem:[%s4 + $0x178] sm:$0xff]
    %v682 = vld [vmem:[%s4 + $0x180] sm:$0xff]
    %v683 = vld [vmem:[%s4 + $0x188] sm:$0xff]
    %v684 = vld [vmem:[%s4 + $0x190] sm:$0xff]
    %v685 = vld [vmem:[%s4 + $0x198] sm:$0xff]
    %v686 = vld [vmem:[%s4 + $0x1a0] sm:$0xff]
    %v687 = vld [vmem:[%s4 + $0x1a8] sm:$0xff]
    %v688 = vld [vmem:[%s4 + $0x1b0] sm:$0xff]
    %v689 = vld [vmem:[%s4 + $0x1b8] sm:$0xff]
    %v690 = vld [vmem:[%s4 + $0x1c0] sm:$0xff]
    %v691 = vld [vmem:[%s4 + $0x1c8] sm:$0xff]
    %v692 = vld [vmem:[%s4 + $0x1d0] sm:$0xff]
    %v693 = vld [vmem:[%s4 + $0x1d8] sm:$0xff]
    %v694 = vld [vmem:[%s4 + $0x1e0] sm:$0xff]
    %v695 = vld [vmem:[%s4 + $0x1e8] sm:$0xff]
    %v696 = vld [vmem:[%s4 + $0x1f0] sm:$0xff]
    %v697 = vld [vmem:[%s4 + $0x1f8] sm:$0xff]
    %v698 = vld [vmem:[%s5] sm:$0xff]
    %v699 = vld [vmem:[%s5 + $0x8] sm:$0xff]
    %v700 = vld [vmem:[%s5 + $0x10] sm:$0xff]
    %v701 = vld [vmem:[%s5 + $0x18] sm:$0xff]
    %v702 = vld [vmem:[%s5 + $0x20] sm:$0xff]
    %v703 = vld [vmem:[%s5 + $0x28] sm:$0xff]
    %v704 = vld [vmem:[%s5 + $0x30] sm:$0xff]
    %v705 = vld [vmem:[%s5 + $0x38] sm:$0xff]
    %v706 = vld [vmem:[%s5 + $0x40] sm:$0xff]
    %v707 = vld [vmem:[%s5 + $0x48] sm:$0xff]
    %v708 = vld [vmem:[%s5 + $0x50] sm:$0xff]
    %v709 = vld [vmem:[%s5 + $0x58] sm:$0xff]
    %v710 = vld [vmem:[%s5 + $0x60] sm:$0xff]
    %v711 = vld [vmem:[%s5 + $0x68] sm:$0xff]
    %v712 = vld [vmem:[%s5 + $0x70] sm:$0xff]
    %v713 = vld [vmem:[%s5 + $0x78] sm:$0xff]
    %v714 = vld [vmem:[%s5 + $0x80] sm:$0xff]
    %v715 = vld [vmem:[%s5 + $0x88] sm:$0xff]
    %v716 = vld [vmem:[%s5 + $0x90] sm:$0xff]
    %v717 = vld [vmem:[%s5 + $0x98] sm:$0xff]
    %v718 = vld [vmem:[%s5 + $0xa0] sm:$0xff]
    %v719 = vld [vmem:[%s5 + $0xa8] sm:$0xff]
    %v720 = vld [vmem:[%s5 + $0xb0] sm:$0xff]
    %v721 = vld [vmem:[%s5 + $0xb8] sm:$0xff]
    %v722 = vld [vmem:[%s5 + $0xc0] sm:$0xff]
    %v723 = vld [vmem:[%s5 + $0xc8] sm:$0xff]
    %v724 = vld [vmem:[%s5 + $0xd0] sm:$0xff]
    %v725 = vld [vmem:[%s5 + $0xd8] sm:$0xff]
    %v726 = vld [vmem:[%s5 + $0xe0] sm:$0xff]
    %v727 = vld [vmem:[%s5 + $0xe8] sm:$0xff]
    %v728 = vld [vmem:[%s5 + $0xf0] sm:$0xff]
    %v729 = vld [vmem:[%s5 + $0xf8] sm:$0xff]
    %731 = vset.pattern.permute.xlu0 0
    %732 = vperm.xlu0 %731, %v698
    %v733 = vpop.permute.xlu0 %732
    %736 = vset.pattern.permute.xlu0 0
    %737 = vperm.xlu0 %736, %v699
    %v738 = vpop.permute.xlu0 %737
    %741 = vset.pattern.permute.xlu0 0
    %742 = vperm.xlu0 %741, %v700
    %v743 = vpop.permute.xlu0 %742
    %746 = vset.pattern.permute.xlu0 0
    %747 = vperm.xlu0 %746, %v701
    %v748 = vpop.permute.xlu0 %747
    %751 = vset.pattern.permute.xlu0 0
    %752 = vperm.xlu0 %751, %v702
    %v753 = vpop.permute.xlu0 %752
    %756 = vset.pattern.permute.xlu0 0
    %757 = vperm.xlu0 %756, %v703
    %v758 = vpop.permute.xlu0 %757
    %761 = vset.pattern.permute.xlu0 0
    %762 = vperm.xlu0 %761, %v704
    %v763 = vpop.permute.xlu0 %762
    %766 = vset.pattern.permute.xlu0 0
    %767 = vperm.xlu0 %766, %v705
    %v768 = vpop.permute.xlu0 %767
    %771 = vset.pattern.permute.xlu0 0
    %772 = vperm.xlu0 %771, %v706
    %v773 = vpop.permute.xlu0 %772
    %776 = vset.pattern.permute.xlu0 0
    %777 = vperm.xlu0 %776, %v707
    %v778 = vpop.permute.xlu0 %777
    %781 = vset.pattern.permute.xlu0 0
    %782 = vperm.xlu0 %781, %v708
    %v783 = vpop.permute.xlu0 %782
    %786 = vset.pattern.permute.xlu0 0
    %787 = vperm.xlu0 %786, %v709
    %v788 = vpop.permute.xlu0 %787
    %791 = vset.pattern.permute.xlu0 0
    %792 = vperm.xlu0 %791, %v710
    %v793 = vpop.permute.xlu0 %792
    %796 = vset.pattern.permute.xlu0 0
    %797 = vperm.xlu0 %796, %v711
    %v798 = vpop.permute.xlu0 %797
    %801 = vset.pattern.permute.xlu0 0
    %802 = vperm.xlu0 %801, %v712
    %v803 = vpop.permute.xlu0 %802
    %806 = vset.pattern.permute.xlu0 0
    %807 = vperm.xlu0 %806, %v713
    %v808 = vpop.permute.xlu0 %807
    %811 = vset.pattern.permute.xlu0 0
    %812 = vperm.xlu0 %811, %v714
    %v813 = vpop.permute.xlu0 %812
    %816 = vset.pattern.permute.xlu0 0
    %817 = vperm.xlu0 %816, %v715
    %v818 = vpop.permute.xlu0 %817
    %821 = vset.pattern.permute.xlu0 0
    %822 = vperm.xlu0 %821, %v716
    %v823 = vpop.permute.xlu0 %822
    %826 = vset.pattern.permute.xlu0 0
    %827 = vperm.xlu0 %826, %v717
    %v828 = vpop.permute.xlu0 %827
    %831 = vset.pattern.permute.xlu0 0
    %832 = vperm.xlu0 %831, %v718
    %v833 = vpop.permute.xlu0 %832
    %836 = vset.pattern.permute.xlu0 0
    %837 = vperm.xlu0 %836, %v719
    %v838 = vpop.permute.xlu0 %837
    %841 = vset.pattern.permute.xlu0 0
    %842 = vperm.xlu0 %841, %v720
    %v843 = vpop.permute.xlu0 %842
    %846 = vset.pattern.permute.xlu0 0
    %847 = vperm.xlu0 %846, %v721
    %v848 = vpop.permute.xlu0 %847
    %851 = vset.pattern.permute.xlu0 0
    %852 = vperm.xlu0 %851, %v722
    %v853 = vpop.permute.xlu0 %852
    %856 = vset.pattern.permute.xlu0 0
    %857 = vperm.xlu0 %856, %v723
    %v858 = vpop.permute.xlu0 %857
    %861 = vset.pattern.permute.xlu0 0
    %862 = vperm.xlu0 %861, %v724
    %v863 = vpop.permute.xlu0 %862
    %866 = vset.pattern.permute.xlu0 0
    %867 = vperm.xlu0 %866, %v725
    %v868 = vpop.permute.xlu0 %867
    %871 = vset.pattern.permute.xlu0 0
    %872 = vperm.xlu0 %871, %v726
    %v873 = vpop.permute.xlu0 %872
    %876 = vset.pattern.permute.xlu0 0
    %877 = vperm.xlu0 %876, %v727
    %v878 = vpop.permute.xlu0 %877
    %881 = vset.pattern.permute.xlu0 0
    %882 = vperm.xlu0 %881, %v728
    %v883 = vpop.permute.xlu0 %882
    %886 = vset.pattern.permute.xlu0 0
    %887 = vperm.xlu0 %886, %v729
    %v888 = vpop.permute.xlu0 %887
    %890 = vmatprep.subr.mxu0 0.0
    %891 = vmatpush1.msra.mxu0 %v602
    %892 = vmatprep.subr.mxu0 0.0
    %893 = vmatpush1.msra.mxu0 %v603
    %894 = vmatprep.subr.mxu0 0.0
    %895 = vmatpush1.msra.mxu0 %v604
    %896 = vmatprep.subr.mxu0 0.0
    %897 = vmatpush1.msra.mxu0 %v605
    %898 = vmatprep.subr.mxu0 0.0
    %899 = vmatpush1.msra.mxu0 %v606
    %900 = vmatprep.subr.mxu0 0.0
    %901 = vmatpush1.msra.mxu0 %v607
    %902 = vmatprep.subr.mxu0 0.0
    %903 = vmatpush1.msra.mxu0 %v608
    %904 = vmatprep.subr.mxu0 0.0
    %905 = vmatpush1.msra.mxu0 %v609
    %906 = vmatprep.subr.mxu0 0.0
    %907 = vmatpush1.msra.mxu0 %v610
    %908 = vmatprep.subr.mxu0 0.0
    %909 = vmatpush1.msra.mxu0 %v611
    %910 = vmatprep.subr.mxu0 0.0
    %911 = vmatpush1.msra.mxu0 %v612
    %912 = vmatprep.subr.mxu0 0.0
    %913 = vmatpush1.msra.mxu0 %v613
    %914 = vmatprep.subr.mxu0 0.0
    %915 = vmatpush1.msra.mxu0 %v614
    %916 = vmatprep.subr.mxu0 0.0
    %917 = vmatpush1.msra.mxu0 %v615
    %918 = vmatprep.subr.mxu0 0.0
    %919 = vmatpush1.msra.mxu0 %v616
    %920 = vmatprep.subr.mxu0 0.0
    %921 = vmatpush1.msra.mxu0 %v617
    %922 = vmatprep.subr.mxu0 0.0
    %923 = vmatpush1.msra.mxu0 %v618
    %924 = vmatprep.subr.mxu0 0.0
    %925 = vmatpush1.msra.mxu0 %v619
    %926 = vmatprep.subr.mxu0 0.0
    %927 = vmatpush1.msra.mxu0 %v620
    %928 = vmatprep.subr.mxu0 0.0
    %929 = vmatpush1.msra.mxu0 %v621
    %930 = vmatprep.subr.mxu0 0.0
    %931 = vmatpush1.msra.mxu0 %v622
    %932 = vmatprep.subr.mxu0 0.0
    %933 = vmatpush1.msra.mxu0 %v623
    %934 = vmatprep.subr.mxu0 0.0
    %935 = vmatpush1.msra.mxu0 %v624
    %936 = vmatprep.subr.mxu0 0.0
    %937 = vmatpush1.msra.mxu0 %v625
    %938 = vmatprep.subr.mxu0 0.0
    %939 = vmatpush1.msra.mxu0 %v626
    %940 = vmatprep.subr.mxu0 0.0
    %941 = vmatpush1.msra.mxu0 %v627
    %942 = vmatprep.subr.mxu0 0.0
    %943 = vmatpush1.msra.mxu0 %v628
    %944 = vmatprep.subr.mxu0 0.0
    %945 = vmatpush1.msra.mxu0 %v629
    %946 = vmatprep.subr.mxu0 0.0
    %947 = vmatpush1.msra.mxu0 %v630
    %948 = vmatprep.subr.mxu0 0.0
    %949 = vmatpush1.msra.mxu0 %v631
    %950 = vmatprep.subr.mxu0 0.0
    %951 = vmatpush1.msra.mxu0 %v632
    %952 = vmatprep.subr.mxu0 0.0
    %953 = vmatpush1.msra.mxu0 %v633
    %954 = vmatprep.mubr.f32.mxu0 %v635
    %955 = vmatmul.mubr.f32.gmra.mrb[0].mxu0 %v634
    %v956 = vpop.f32.mrb[0].mxu0
    %v957 = vadd.f32 %v733, %v956
    %v958 = vpop.f32.mrb[0].mxu0
    %959 = vmatprep.mubr.f32.mxu0 %v637
    %960 = vmatmul.mubr.f32.gmra.mrb[0].mxu0 %v636
    %v961 = vpop.f32.mrb[0].mxu0
    %v962 = vadd.f32 %v738, %v961
    %v963 = vpop.f32.mrb[0].mxu0
    %964 = vmatprep.mubr.f32.mxu0 %v639
    %965 = vmatmul.mubr.f32.gmra.mrb[0].mxu0 %v638
    %v966 = vpop.f32.mrb[0].mxu0
    %v967 = vadd.f32 %v743, %v966
    %v968 = vpop.f32.mrb[0].mxu0
    %969 = vmatprep.mubr.f32.mxu0 %v641
    %970 = vmatmul.mubr.f32.gmra.mrb[0].mxu0 %v640
    %v971 = vpop.f32.mrb[0].mxu0
    %v972 = vadd.f32 %v748, %v971
    %v973 = vpop.f32.mrb[0].mxu0
    %974 = vmatprep.mubr.f32.mxu0 %v643
    %975 = vmatmul.mubr.f32.gmra.mrb[0].mxu0 %v642
    %v976 = vpop.f32.mrb[0].mxu0
    %v977 = vadd.f32 %v753, %v976
    %v978 = vpop.f32.mrb[0].mxu0
    %979 = vmatprep.mubr.f32.mxu0 %v645
    %980 = vmatmul.mubr.f32.gmra.mrb[0].mxu0 %v644
    %v981 = vpop.f32.mrb[0].mxu0
    %v982 = vadd.f32 %v758, %v981
    %v983 = vpop.f32.mrb[0].mxu0
    %984 = vmatprep.mubr.f32.mxu0 %v647
    %985 = vmatmul.mubr.f32.gmra.mrb[0].mxu0 %v646
    %v986 = vpop.f32.mrb[0].mxu0
    %v987 = vadd.f32 %v763, %v986
    %v988 = vpop.f32.mrb[0].mxu0
    %989 = vmatprep.mubr.f32.mxu0 %v649
    %990 = vmatmul.mubr.f32.gmra.mrb[0].mxu0 %v648
    %v991 = vpop.f32.mrb[0].mxu0
    %v992 = vadd.f32 %v768, %v991
    %v993 = vpop.f32.mrb[0].mxu0
    %994 = vmatprep.mubr.f32.mxu0 %v651
    %995 = vmatmul.mubr.f32.gmra.mrb[0].mxu0 %v650
    %v996 = vpop.f32.mrb[0].mxu0
    %v997 = vadd.f32 %v773, %v996
    %v998 = vpop.f32.mrb[0].mxu0
    %999 = vmatprep.mubr.f32.mxu0 %v653
    %1000 = vmatmul.mubr.f32.gmra.mrb[0].mxu0 %v652
    %v1001 = vpop.f32.mrb[0].mxu0
    %v1002 = vadd.f32 %v778, %v1001
    %v1003 = vpop.f32.mrb[0].mxu0
    %1004 = vmatprep.mubr.f32.mxu0 %v655
    %1005 = vmatmul.mubr.f32.gmra.mrb[0].mxu0 %v654
    %v1006 = vpop.f32.mrb[0].mxu0
    %v1007 = vadd.f32 %v783, %v1006
    %v1008 = vpop.f32.mrb[0].mxu0
    %1009 = vmatprep.mubr.f32.mxu0 %v657
    %1010 = vmatmul.mubr.f32.gmra.mrb[0].mxu0 %v656
    %v1011 = vpop.f32.mrb[0].mxu0
    %v1012 = vadd.f32 %v788, %v1011
    %v1013 = vpop.f32.mrb[0].mxu0
    %1014 = vmatprep.mubr.f32.mxu0 %v659
    %1015 = vmatmul.mubr.f32.gmra.mrb[0].mxu0 %v658
    %v1016 = vpop.f32.mrb[0].mxu0
    %v1017 = vadd.f32 %v793, %v1016
    %v1018 = vpop.f32.mrb[0].mxu0
    %1019 = vmatprep.mubr.f32.mxu0 %v661
    %1020 = vmatmul.mubr.f32.gmra.mrb[0].mxu0 %v660
    %v1021 = vpop.f32.mrb[0].mxu0
    %v1022 = vadd.f32 %v798, %v1021
    %v1023 = vpop.f32.mrb[0].mxu0
    %1024 = vmatprep.mubr.f32.mxu0 %v663
    %1025 = vmatmul.mubr.f32.gmra.mrb[0].mxu0 %v662
    %v1026 = vpop.f32.mrb[0].mxu0
    %v1027 = vadd.f32 %v803, %v1026
    %v1028 = vpop.f32.mrb[0].mxu0
    %1029 = vmatprep.mubr.f32.mxu0 %v665
    %1030 = vmatmul.mubr.f32.gmra.mrb[0].mxu0 %v664
    %v1031 = vpop.f32.mrb[0].mxu0
    %v1032 = vadd.f32 %v808, %v1031
    %v1033 = vpop.f32.mrb[0].mxu0
    %1034 = vmatprep.mubr.f32.mxu0 %v667
    %1035 = vmatmul.mubr.f32.gmra.mrb[0].mxu0 %v666
    %v1036 = vpop.f32.mrb[0].mxu0
    %v1037 = vadd.f32 %v813, %v1036
    %v1038 = vpop.f32.mrb[0].mxu0
    %1039 = vmatprep.mubr.f32.mxu0 %v669
    %1040 = vmatmul.mubr.f32.gmra.mrb[0].mxu0 %v668
    %v1041 = vpop.f32.mrb[0].mxu0
    %v1042 = vadd.f32 %v818, %v1041
    %v1043 = vpop.f32.mrb[0].mxu0
    %1044 = vmatprep.mubr.f32.mxu0 %v671
    %1045 = vmatmul.mubr.f32.gmra.mrb[0].mxu0 %v670
    %v1046 = vpop.f32.mrb[0].mxu0
    %v1047 = vadd.f32 %v823, %v1046
    %v1048 = vpop.f32.mrb[0].mxu0
    %1049 = vmatprep.mubr.f32.mxu0 %v673
    %1050 = vmatmul.mubr.f32.gmra.mrb[0].mxu0 %v672
    %v1051 = vpop.f32.mrb[0].mxu0
    %v1052 = vadd.f32 %v828, %v1051
    %v1053 = vpop.f32.mrb[0].mxu0
    %1054 = vmatprep.mubr.f32.mxu0 %v675
    %1055 = vmatmul.mubr.f32.gmra.mrb[0].mxu0 %v674
    %v1056 = vpop.f32.mrb[0].mxu0
    %v1057 = vadd.f32 %v833, %v1056
    %v1058 = vpop.f32.mrb[0].mxu0
    %1059 = vmatprep.mubr.f32.mxu0 %v677
    %1060 = vmatmul.mubr.f32.gmra.mrb[0].mxu0 %v676
    %v1061 = vpop.f32.mrb[0].mxu0
    %v1062 = vadd.f32 %v838, %v1061
    %v1063 = vpop.f32.mrb[0].mxu0
    %1064 = vmatprep.mubr.f32.mxu0 %v679
    %1065 = vmatmul.mubr.f32.gmra.mrb[0].mxu0 %v678
    %v1066 = vpop.f32.mrb[0].mxu0
    %v1067 = vadd.f32 %v843, %v1066
    %v1068 = vpop.f32.mrb[0].mxu0
    %1069 = vmatprep.mubr.f32.mxu0 %v681
    %1070 = vmatmul.mubr.f32.gmra.mrb[0].mxu0 %v680
    %v1071 = vpop.f32.mrb[0].mxu0
    %v1072 = vadd.f32 %v848, %v1071
    %v1073 = vpop.f32.mrb[0].mxu0
    %1074 = vmatprep.mubr.f32.mxu0 %v683
    %1075 = vmatmul.mubr.f32.gmra.mrb[0].mxu0 %v682
    %v1076 = vpop.f32.mrb[0].mxu0
    %v1077 = vadd.f32 %v853, %v1076
    %v1078 = vpop.f32.mrb[0].mxu0
    %1079 = vmatprep.mubr.f32.mxu0 %v685
    %1080 = vmatmul.mubr.f32.gmra.mrb[0].mxu0 %v684
    %v1081 = vpop.f32.mrb[0].mxu0
    %v1082 = vadd.f32 %v858, %v1081
    %v1083 = vpop.f32.mrb[0].mxu0
    %1084 = vmatprep.mubr.f32.mxu0 %v687
    %1085 = vmatmul.mubr.f32.gmra.mrb[0].mxu0 %v686
    %v1086 = vpop.f32.mrb[0].mxu0
    %v1087 = vadd.f32 %v863, %v1086
    %v1088 = vpop.f32.mrb[0].mxu0
    %1089 = vmatprep.mubr.f32.mxu0 %v689
    %1090 = vmatmul.mubr.f32.gmra.mrb[0].mxu0 %v688
    %v1091 = vpop.f32.mrb[0].mxu0
    %v1092 = vadd.f32 %v868, %v1091
    %v1093 = vpop.f32.mrb[0].mxu0
    %1094 = vmatprep.mubr.f32.mxu0 %v691
    %1095 = vmatmul.mubr.f32.gmra.mrb[0].mxu0 %v690
    %v1096 = vpop.f32.mrb[0].mxu0
    %v1097 = vadd.f32 %v873, %v1096
    %v1098 = vpop.f32.mrb[0].mxu0
    %1099 = vmatprep.mubr.f32.mxu0 %v693
    %1100 = vmatmul.mubr.f32.gmra.mrb[0].mxu0 %v692
    %v1101 = vpop.f32.mrb[0].mxu0
    %v1102 = vadd.f32 %v878, %v1101
    %v1103 = vpop.f32.mrb[0].mxu0
    %1104 = vmatprep.mubr.f32.mxu0 %v695
    %1105 = vmatmul.mubr.f32.gmra.mrb[0].mxu0 %v694
    %v1106 = vpop.f32.mrb[0].mxu0
    %v1107 = vadd.f32 %v883, %v1106
    %v1108 = vpop.f32.mrb[0].mxu0
    %1109 = vmatprep.mubr.f32.mxu0 %v697
    %1110 = vmatmul.mubr.f32.gmra.mrb[0].mxu0 %v696
    %v1111 = vpop.f32.mrb[0].mxu0
    %v1112 = vadd.f32 %v888, %v1111
    %v1113 = vpop.f32.mrb[0].mxu0
    %1114 = vdwg.mxu0
    %v1115 = vmax.f32 %v957, 0.0
    %v1116 = vmax.f32 %v962, 0.0
    %v1117 = vmax.f32 %v967, 0.0
    %v1118 = vmax.f32 %v972, 0.0
    %v1119 = vmax.f32 %v977, 0.0
    %v1120 = vmax.f32 %v982, 0.0
    %v1121 = vmax.f32 %v987, 0.0
    %v1122 = vmax.f32 %v992, 0.0
    %v1123 = vmax.f32 %v997, 0.0
    %v1124 = vmax.f32 %v1002, 0.0
    %v1125 = vmax.f32 %v1007, 0.0
    %v1126 = vmax.f32 %v1012, 0.0
    %v1127 = vmax.f32 %v1017, 0.0
    %v1128 = vmax.f32 %v1022, 0.0
    %v1129 = vmax.f32 %v1027, 0.0
    %v1130 = vmax.f32 %v1032, 0.0
    %v1131 = vmax.f32 %v1037, 0.0
    %v1132 = vmax.f32 %v1042, 0.0
    %v1133 = vmax.f32 %v1047, 0.0
    %v1134 = vmax.f32 %v1052, 0.0
    %v1135 = vmax.f32 %v1057, 0.0
    %v1136 = vmax.f32 %v1062, 0.0
    %v1137 = vmax.f32 %v1067, 0.0
    %v1138 = vmax.f32 %v1072, 0.0
    %v1139 = vmax.f32 %v1077, 0.0
    %v1140 = vmax.f32 %v1082, 0.0
    %v1141 = vmax.f32 %v1087, 0.0
    %v1142 = vmax.f32 %v1092, 0.0
    %v1143 = vmax.f32 %v1097, 0.0
    %v1144 = vmax.f32 %v1102, 0.0
    %v1145 = vmax.f32 %v1107, 0.0
    %v1146 = vmax.f32 %v1112, 0.0
    %v1147 = vld [vmem:[%s6] sm:$0xff]
    %v1148 = vld [vmem:[%s6 + $0x8] sm:$0xff]
    %v1149 = vld [vmem:[%s6 + $0x10] sm:$0xff]
    %v1150 = vld [vmem:[%s6 + $0x18] sm:$0xff]
    %v1151 = vld [vmem:[%s6 + $0x20] sm:$0xff]
    %v1152 = vld [vmem:[%s6 + $0x28] sm:$0xff]
    %v1153 = vld [vmem:[%s6 + $0x30] sm:$0xff]
    %v1154 = vld [vmem:[%s6 + $0x38] sm:$0xff]
    %v1155 = vld [vmem:[%s7] sm:$0xff]
    %v1156 = vld [vmem:[%s7 + $0x8] sm:$0xff]
    %v1157 = vld [vmem:[%s7 + $0x10] sm:$0xff]
    %v1158 = vld [vmem:[%s7 + $0x18] sm:$0xff]
    %1160 = vset.pattern.permute.xlu0 0
    %1161 = vperm.xlu0 %1160, %v1155
    %v1162 = vpop.permute.xlu0 %1161
    %1165 = vset.pattern.permute.xlu0 0
    %1166 = vperm.xlu0 %1165, %v1156
    %v1167 = vpop.permute.xlu0 %1166
    %1170 = vset.pattern.permute.xlu0 0
    %1171 = vperm.xlu0 %1170, %v1157
    %v1172 = vpop.permute.xlu0 %1171
    %1175 = vset.pattern.permute.xlu0 0
    %1176 = vperm.xlu0 %1175, %v1158
    %v1177 = vpop.permute.xlu0 %1176
    %1179 = vmatprep.subr.mxu0 0.0
    %1180 = vmatpush1.msra.mxu0 %v1115
    %1181 = vmatprep.subr.mxu0 0.0
    %1182 = vmatpush1.msra.mxu0 %v1116
    %1183 = vmatprep.subr.mxu0 0.0
    %1184 = vmatpush1.msra.mxu0 %v1117
    %1185 = vmatprep.subr.mxu0 0.0
    %1186 = vmatpush1.msra.mxu0 %v1118
    %1187 = vmatprep.subr.mxu0 0.0
    %1188 = vmatpush1.msra.mxu0 %v1119
    %1189 = vmatprep.subr.mxu0 0.0
    %1190 = vmatpush1.msra.mxu0 %v1120
    %1191 = vmatprep.subr.mxu0 0.0
    %1192 = vmatpush1.msra.mxu0 %v1121
    %1193 = vmatprep.subr.mxu0 0.0
    %1194 = vmatpush1.msra.mxu0 %v1122
    %1195 = vmatprep.subr.mxu0 0.0
    %1196 = vmatpush1.msra.mxu0 %v1123
    %1197 = vmatprep.subr.mxu0 0.0
    %1198 = vmatpush1.msra.mxu0 %v1124
    %1199 = vmatprep.subr.mxu0 0.0
    %1200 = vmatpush1.msra.mxu0 %v1125
    %1201 = vmatprep.subr.mxu0 0.0
    %1202 = vmatpush1.msra.mxu0 %v1126
    %1203 = vmatprep.subr.mxu0 0.0
    %1204 = vmatpush1.msra.mxu0 %v1127
    %1205 = vmatprep.subr.mxu0 0.0
    %1206 = vmatpush1.msra.mxu0 %v1128
    %1207 = vmatprep.subr.mxu0 0.0
    %1208 = vmatpush1.msra.mxu0 %v1129
    %1209 = vmatprep.subr.mxu0 0.0
    %1210 = vmatpush1.msra.mxu0 %v1130
    %1211 = vmatprep.subr.mxu0 0.0
    %1212 = vmatpush1.msra.mxu0 %v1131
    %1213 = vmatprep.subr.mxu0 0.0
    %1214 = vmatpush1.msra.mxu0 %v1132
    %1215 = vmatprep.subr.mxu0 0.0
    %1216 = vmatpush1.msra.mxu0 %v1133
    %1217 = vmatprep.subr.mxu0 0.0
    %1218 = vmatpush1.msra.mxu0 %v1134
    %1219 = vmatprep.subr.mxu0 0.0
    %1220 = vmatpush1.msra.mxu0 %v1135
    %1221 = vmatprep.subr.mxu0 0.0
    %1222 = vmatpush1.msra.mxu0 %v1136
    %1223 = vmatprep.subr.mxu0 0.0
    %1224 = vmatpush1.msra.mxu0 %v1137
    %1225 = vmatprep.subr.mxu0 0.0
    %1226 = vmatpush1.msra.mxu0 %v1138
    %1227 = vmatprep.subr.mxu0 0.0
    %1228 = vmatpush1.msra.mxu0 %v1139
    %1229 = vmatprep.subr.mxu0 0.0
    %1230 = vmatpush1.msra.mxu0 %v1140
    %1231 = vmatprep.subr.mxu0 0.0
    %1232 = vmatpush1.msra.mxu0 %v1141
    %1233 = vmatprep.subr.mxu0 0.0
    %1234 = vmatpush1.msra.mxu0 %v1142
    %1235 = vmatprep.subr.mxu0 0.0
    %1236 = vmatpush1.msra.mxu0 %v1143
    %1237 = vmatprep.subr.mxu0 0.0
    %1238 = vmatpush1.msra.mxu0 %v1144
    %1239 = vmatprep.subr.mxu0 0.0
    %1240 = vmatpush1.msra.mxu0 %v1145
    %1241 = vmatprep.subr.mxu0 0.0
    %1242 = vmatpush1.msra.mxu0 %v1146
    %1243 = vmatprep.mubr.f32.mxu0 %v1148
    %1244 = vmatmul.mubr.f32.gmra.mrb[0].mxu0 %v1147
    %v1245 = vpop.f32.mrb[0].mxu0
    %v1246 = vadd.f32 %v1162, %v1245
    %v1247 = vpop.f32.mrb[0].mxu0
    %1248 = vmatprep.mubr.f32.mxu0 %v1150
    %1249 = vmatmul.mubr.f32.gmra.mrb[0].mxu0 %v1149
    %v1250 = vpop.f32.mrb[0].mxu0
    %v1251 = vadd.f32 %v1167, %v1250
    %v1252 = vpop.f32.mrb[0].mxu0
    %1253 = vmatprep.mubr.f32.mxu0 %v1152
    %1254 = vmatmul.mubr.f32.gmra.mrb[0].mxu0 %v1151
    %v1255 = vpop.f32.mrb[0].mxu0
    %v1256 = vadd.f32 %v1172, %v1255
    %v1257 = vpop.f32.mrb[0].mxu0
    %1258 = vmatprep.mubr.f32.mxu0 %v1154
    %1259 = vmatmul.mubr.f32.gmra.mrb[0].mxu0 %v1153
    %v1260 = vpop.f32.mrb[0].mxu0
    %v1261 = vadd.f32 %v1177, %v1260
    %v1262 = vpop.f32.mrb[0].mxu0
    %1263 = vdwg.mxu0
    %v1264 = vmax.f32 %v1246, 0.0
    %v1265 = vmax.f32 %v1251, 0.0
    %v1266 = vmax.f32 %v1256, 0.0
    %v1267 = vmax.f32 %v1261, 0.0
    %v1268 = vld [vmem:[%s8] sm:$0x1]
    %v1269 = vld [vmem:[#allocation2] sm:$0x1]
    %1271 = vset.pattern.permute.xlu0 0
    %1272 = vperm.xlu0 %1271, %v1269
    %v1273 = vpop.permute.xlu0 %1272
    %v1275 = vlaneseq
    %v1276 = vshrl.u32 %v1275, 7
    %v1277 = vsub.s32 0, %v1276
    %v1278 = vrot.slane %v1273, %v1277
    %v1280 = vsel %vm280, %v1268, 0
    %1282 = vmatprep.subr.mxu0 0.0
    %1283 = vmatpush1.msra.mxu0 %v1264
    %1284 = vmatprep.subr.mxu0 0.0
    %1285 = vmatpush1.msra.mxu0 %v1265
    %1286 = vmatprep.subr.mxu0 0.0
    %1287 = vmatpush1.msra.mxu0 %v1266
    %1288 = vmatprep.subr.mxu0 0.0
    %1289 = vmatpush1.msra.mxu0 %v1267
    %1290 = vmatprep.subr.mxu0 0.0
    %1291 = vmatpush1.msra.mxu0 0.0
    %1292 = vmatprep.subr.mxu0 0.0
    %1293 = vmatpush1.msra.mxu0 0.0
    %1294 = vmatprep.subr.mxu0 0.0
    %1295 = vmatpush1.msra.mxu0 0.0
    %1296 = vmatprep.subr.mxu0 0.0
    %1297 = vmatpush1.msra.mxu0 0.0
    %1298 = vmatprep.subr.mxu0 0.0
    %1299 = vmatpush1.msra.mxu0 0.0
    %1300 = vmatprep.subr.mxu0 0.0
    %1301 = vmatpush1.msra.mxu0 0.0
    %1302 = vmatprep.subr.mxu0 0.0
    %1303 = vmatpush1.msra.mxu0 0.0
    %1304 = vmatprep.subr.mxu0 0.0
    %1305 = vmatpush1.msra.mxu0 0.0
    %1306 = vmatprep.subr.mxu0 0.0
    %1307 = vmatpush1.msra.mxu0 0.0
    %1308 = vmatprep.subr.mxu0 0.0
    %1309 = vmatpush1.msra.mxu0 0.0
    %1310 = vmatprep.subr.mxu0 0.0
    %1311 = vmatpush1.msra.mxu0 0.0
    %1312 = vmatprep.subr.mxu0 0.0
    %1313 = vmatpush1.msra.mxu0 0.0
    %1314 = vmatprep.subr.mxu0 0.0
    %1315 = vmatpush1.msra.mxu0 0.0
    %1316 = vmatprep.subr.mxu0 0.0
    %1317 = vmatpush1.msra.mxu0 0.0
    %1318 = vmatprep.subr.mxu0 0.0
    %1319 = vmatpush1.msra.mxu0 0.0
    %1320 = vmatprep.subr.mxu0 0.0
    %1321 = vmatpush1.msra.mxu0 0.0
    %1322 = vmatprep.subr.mxu0 0.0
    %1323 = vmatpush1.msra.mxu0 0.0
    %1324 = vmatprep.subr.mxu0 0.0
    %1325 = vmatpush1.msra.mxu0 0.0
    %1326 = vmatprep.subr.mxu0 0.0
    %1327 = vmatpush1.msra.mxu0 0.0
    %1328 = vmatprep.subr.mxu0 0.0
    %1329 = vmatpush1.msra.mxu0 0.0
    %1330 = vmatprep.subr.mxu0 0.0
    %1331 = vmatpush1.msra.mxu0 0.0
    %1332 = vmatprep.subr.mxu0 0.0
    %1333 = vmatpush1.msra.mxu0 0.0
    %1334 = vmatprep.subr.mxu0 0.0
    %1335 = vmatpush1.msra.mxu0 0.0
    %1336 = vmatprep.subr.mxu0 0.0
    %1337 = vmatpush1.msra.mxu0 0.0
    %1338 = vmatprep.subr.mxu0 0.0
    %1339 = vmatpush1.msra.mxu0 0.0
    %1340 = vmatprep.subr.mxu0 0.0
    %1341 = vmatpush1.msra.mxu0 0.0
    %1342 = vmatprep.subr.mxu0 0.0
    %1343 = vmatpush1.msra.mxu0 0.0
    %1344 = vmatprep.subr.mxu0 0.0
    %1345 = vmatpush1.msra.mxu0 0.0
    %1346 = vmatprep.mubr.f32.mxu0 0.0
    %1347 = vmatmul.mubr.f32.gmra.mrb[0].mxu0 %v1280
    %v1348 = vpop.f32.mrb[0].mxu0
    %v1349 = vadd.f32 %v1278, %v1348
    %v1350 = vpop.f32.mrb[0].mxu0
    %1351 = vdwg.mxu0
    %v1352 = vxor.u32 %v1349, 2147483648
    %v1353 = vmul.f32 %v1352, 1.442695
    %v1354 = vpow.pop %v1353
    %v1355 = vadd.f32 %v1354, 1.0
    %v1356 = vrcp.pop %v1355
    %v1357 = vmul.f32 1.0, %v1356
    %v1358 = vld [vmem:[%s1] sm:$0xf]
    %v1360 = vsel %vm280, %v1358, 0
    %1362 = vmatprep.subr.mxu0 0.0
    %1363 = vmatpush1.msra.mxu0 %v52
    %1364 = vmatprep.subr.mxu0 0.0
    %1365 = vmatpush1.msra.mxu0 %v53
    %1366 = vmatprep.subr.mxu0 0.0
    %1367 = vmatpush1.msra.mxu0 %v54
    %1368 = vmatprep.subr.mxu0 0.0
    %1369 = vmatpush1.msra.mxu0 %v55
    %1370 = vmatprep.subr.mxu0 0.0
    %1371 = vmatpush1.msra.mxu0 0.0
    %1372 = vmatprep.subr.mxu0 0.0
    %1373 = vmatpush1.msra.mxu0 0.0
    %1374 = vmatprep.subr.mxu0 0.0
    %1375 = vmatpush1.msra.mxu0 0.0
    %1376 = vmatprep.subr.mxu0 0.0
    %1377 = vmatpush1.msra.mxu0 0.0
    %1378 = vmatprep.subr.mxu0 0.0
    %1379 = vmatpush1.msra.mxu0 0.0
    %1380 = vmatprep.subr.mxu0 0.0
    %1381 = vmatpush1.msra.mxu0 0.0
    %1382 = vmatprep.subr.mxu0 0.0
    %1383 = vmatpush1.msra.mxu0 0.0
    %1384 = vmatprep.subr.mxu0 0.0
    %1385 = vmatpush1.msra.mxu0 0.0
    %1386 = vmatprep.subr.mxu0 0.0
    %1387 = vmatpush1.msra.mxu0 0.0
    %1388 = vmatprep.subr.mxu0 0.0
    %1389 = vmatpush1.msra.mxu0 0.0
    %1390 = vmatprep.subr.mxu0 0.0
    %1391 = vmatpush1.msra.mxu0 0.0
    %1392 = vmatprep.subr.mxu0 0.0
    %1393 = vmatpush1.msra.mxu0 0.0
    %1394 = vmatprep.subr.mxu0 0.0
    %1395 = vmatpush1.msra.mxu0 0.0
    %1396 = vmatprep.subr.mxu0 0.0
    %1397 = vmatpush1.msra.mxu0 0.0
    %1398 = vmatprep.subr.mxu0 0.0
    %1399 = vmatpush1.msra.mxu0 0.0
    %1400 = vmatprep.subr.mxu0 0.0
    %1401 = vmatpush1.msra.mxu0 0.0
    %1402 = vmatprep.subr.mxu0 0.0
    %1403 = vmatpush1.msra.mxu0 0.0
    %1404 = vmatprep.subr.mxu0 0.0
    %1405 = vmatpush1.msra.mxu0 0.0
    %1406 = vmatprep.subr.mxu0 0.0
    %1407 = vmatpush1.msra.mxu0 0.0
    %1408 = vmatprep.subr.mxu0 0.0
    %1409 = vmatpush1.msra.mxu0 0.0
    %1410 = vmatprep.subr.mxu0 0.0
    %1411 = vmatpush1.msra.mxu0 0.0
    %1412 = vmatprep.subr.mxu0 0.0
    %1413 = vmatpush1.msra.mxu0 0.0
    %1414 = vmatprep.subr.mxu0 0.0
    %1415 = vmatpush1.msra.mxu0 0.0
    %1416 = vmatprep.subr.mxu0 0.0
    %1417 = vmatpush1.msra.mxu0 0.0
    %1418 = vmatprep.subr.mxu0 0.0
    %1419 = vmatpush1.msra.mxu0 0.0
    %1420 = vmatprep.subr.mxu0 0.0
    %1421 = vmatpush1.msra.mxu0 0.0
    %1422 = vmatprep.subr.mxu0 0.0
    %1423 = vmatpush1.msra.mxu0 0.0
    %1424 = vmatprep.subr.mxu0 0.0
    %1425 = vmatpush1.msra.mxu0 0.0
    %1426 = vmatprep.mubr.f32.mxu0 0.0
    %1427 = vmatmul.mubr.f32.gmra.mrb[0].mxu0 %v1360
    %v1428 = vpop.f32.mrb[0].mxu0
    %v1429 = vadd.f32 0.0, %v1428
    %v1430 = vpop.f32.mrb[0].mxu0
    %1431 = vdwg.mxu0
    %v1432 = vmul.f32 %v1429, %v1429
    %v1433 = vmul.f32 %v1432, 2.0
    %vm1434 = vcmask 1043456
    %v1435 = vsel %vm1434, %v1432, 0.0
    %v1436 = vrot.slane %v1435, 4
    %v1437 = vadd.f32 %v1435, %v1436
    %v1438 = vrot.slane %v1437, 2
    %v1439 = vadd.f32 %v1437, %v1438
    %v1440 = vrot.slane %v1439, 1
    %v1441 = vadd.f32 %v1439, %v1440
    %v1442 = vsub.f32 %v1433, %v1441
    %v1443 = vld [vmem:[%s10] sm:$0xff]
    %v1444 = vld [vmem:[%s10 + $0x8] sm:$0xff]
    %v1445 = vld [vmem:[%s11] sm:$0xff]
    %v1446 = vld [vmem:[%s11 + $0x8] sm:$0xff]
    %1448 = vset.pattern.permute.xlu0 0
    %1449 = vperm.xlu0 %1448, %v1443
    %v1450 = vpop.permute.xlu0 %1449
    %1453 = vset.pattern.permute.xlu0 0
    %1454 = vperm.xlu0 %1453, %v1444
    %v1455 = vpop.permute.xlu0 %1454
    %v1457 = vlaneseq
    %v1458 = vshrl.u32 %v1457, 7
    %v1459 = vsub.s32 0, %v1458
    %v1460 = vrot.slane %v1442, %v1459
    %v1461 = vmul.f32 %v1450, %v1460
    %v1462 = vmul.f32 %v1455, %v1460
    %1464 = vset.pattern.permute.xlu0 0
    %1465 = vperm.xlu0 %1464, %v1445
    %v1466 = vpop.permute.xlu0 %1465
    %1469 = vset.pattern.permute.xlu0 0
    %1470 = vperm.xlu0 %1469, %v1446
    %v1471 = vpop.permute.xlu0 %1470
    %v1473 = vadd.f32 %v1461, %v1466
    %v1474 = vadd.f32 %v1462, %v1471
    %v1475 = vmax.f32 %v1473, 0.0
    %v1476 = vmax.f32 %v1474, 0.0
    %v1477 = vld [vmem:[%s12] sm:$0x1]
    %v1478 = vld [vmem:[#allocation3] sm:$0x1]
    %1480 = vset.pattern.permute.xlu0 0
    %1481 = vperm.xlu0 %1480, %v1478
    %v1482 = vpop.permute.xlu0 %1481
    %v1484 = vlaneseq
    %v1485 = vshrl.u32 %v1484, 7
    %v1486 = vsub.s32 0, %v1485
    %v1487 = vrot.slane %v1482, %v1486
    %vm1488 = vcmask 130048
    %v1490 = vsel %vm1488, %v1477, 0
    %1492 = vmatprep.subr.mxu0 0.0
    %1493 = vmatpush1.msra.mxu0 %v1475
    %1494 = vmatprep.subr.mxu0 0.0
    %1495 = vmatpush1.msra.mxu0 %v1476
    %1496 = vmatprep.subr.mxu0 0.0
    %1497 = vmatpush1.msra.mxu0 0.0
    %1498 = vmatprep.subr.mxu0 0.0
    %1499 = vmatpush1.msra.mxu0 0.0
    %1500 = vmatprep.subr.mxu0 0.0
    %1501 = vmatpush1.msra.mxu0 0.0
    %1502 = vmatprep.subr.mxu0 0.0
    %1503 = vmatpush1.msra.mxu0 0.0
    %1504 = vmatprep.subr.mxu0 0.0
    %1505 = vmatpush1.msra.mxu0 0.0
    %1506 = vmatprep.subr.mxu0 0.0
    %1507 = vmatpush1.msra.mxu0 0.0
    %1508 = vmatprep.subr.mxu0 0.0
    %1509 = vmatpush1.msra.mxu0 0.0
    %1510 = vmatprep.subr.mxu0 0.0
    %1511 = vmatpush1.msra.mxu0 0.0
    %1512 = vmatprep.subr.mxu0 0.0
    %1513 = vmatpush1.msra.mxu0 0.0
    %1514 = vmatprep.subr.mxu0 0.0
    %1515 = vmatpush1.msra.mxu0 0.0
    %1516 = vmatprep.subr.mxu0 0.0
    %1517 = vmatpush1.msra.mxu0 0.0
    %1518 = vmatprep.subr.mxu0 0.0
    %1519 = vmatpush1.msra.mxu0 0.0
    %1520 = vmatprep.subr.mxu0 0.0
    %1521 = vmatpush1.msra.mxu0 0.0
    %1522 = vmatprep.subr.mxu0 0.0
    %1523 = vmatpush1.msra.mxu0 0.0
    %1524 = vmatprep.subr.mxu0 0.0
    %1525 = vmatpush1.msra.mxu0 0.0
    %1526 = vmatprep.subr.mxu0 0.0
    %1527 = vmatpush1.msra.mxu0 0.0
    %1528 = vmatprep.subr.mxu0 0.0
    %1529 = vmatpush1.msra.mxu0 0.0
    %1530 = vmatprep.subr.mxu0 0.0
    %1531 = vmatpush1.msra.mxu0 0.0
    %1532 = vmatprep.subr.mxu0 0.0
    %1533 = vmatpush1.msra.mxu0 0.0
    %1534 = vmatprep.subr.mxu0 0.0
    %1535 = vmatpush1.msra.mxu0 0.0
    %1536 = vmatprep.subr.mxu0 0.0
    %1537 = vmatpush1.msra.mxu0 0.0
    %1538 = vmatprep.subr.mxu0 0.0
    %1539 = vmatpush1.msra.mxu0 0.0
    %1540 = vmatprep.subr.mxu0 0.0
    %1541 = vmatpush1.msra.mxu0 0.0
    %1542 = vmatprep.subr.mxu0 0.0
    %1543 = vmatpush1.msra.mxu0 0.0
    %1544 = vmatprep.subr.mxu0 0.0
    %1545 = vmatpush1.msra.mxu0 0.0
    %1546 = vmatprep.subr.mxu0 0.0
    %1547 = vmatpush1.msra.mxu0 0.0
    %1548 = vmatprep.subr.mxu0 0.0
    %1549 = vmatpush1.msra.mxu0 0.0
    %1550 = vmatprep.subr.mxu0 0.0
    %1551 = vmatpush1.msra.mxu0 0.0
    %1552 = vmatprep.subr.mxu0 0.0
    %1553 = vmatpush1.msra.mxu0 0.0
    %1554 = vmatprep.subr.mxu0 0.0
    %1555 = vmatpush1.msra.mxu0 0.0
    %1556 = vmatprep.mubr.f32.mxu0 0.0
    %1557 = vmatmul.mubr.f32.gmra.mrb[0].mxu0 %v1490
    %v1558 = vpop.f32.mrb[0].mxu0
    %v1559 = vadd.f32 %v1487, %v1558
    %v1560 = vpop.f32.mrb[0].mxu0
    %1561 = vdwg.mxu0
    %v1562 = vxor.u32 %v1559, 2147483648
    %v1563 = vmul.f32 %v1562, 1.442695
    %v1564 = vpow.pop %v1563
    %v1565 = vadd.f32 %v1564, 1.0
    %v1566 = vrcp.pop %v1565
    %v1567 = vmul.f32 1.0, %v1566
    %v1568 = vmul.f32 %v1357, 0.7
    %v1569 = vmul.f32 %v1567, 0.3
    %v1570 = vadd.f32 %v1568, %v1569
    %1571 = vst [vmem:[#allocation4] sm:$0x1] %v1570
    // Predicated region
    $region58: #{tpu_custom_call.1} parent=1 // pred_check
      _
    $region59: #{tpu_custom_call.1} parent=1 // pred_check_branch
      %1573 = sbr.rel (0) target = $region61
    $region60: #{tpu_custom_call.1} parent=1 // pred_region
      %s1575 = ssub.s32 16, 16
      %1576 = vsyncadd [#allocation5], %s1575
      %s1578 = sshll.u32 [#allocation4], 4
      %s1579 = int_to_ptr.vmem [resolvable:$true] %s1578
      %1581 = dma.vmem_to_hbm [thread:$0]  %s1579, 16, %s14, [#allocation5]
    $region61: #{tpu_custom_call.1} parent=1 // pred_fallthru
      _
    // Predicated region
    $region62: #{tpu_custom_call.1} parent=1 // pred_check
      _
    $region63: #{tpu_custom_call.1} parent=1 // pred_check_branch
      %1583 = sbr.rel (0) target = $region65
    $region64: #{tpu_custom_call.1} parent=1 // pred_region
      %1584 = dma.done [#allocation5], 16
    $region65: #{tpu_custom_call.1} parent=1 // pred_fallthru
      _
    %1585 = vsyncpa [#allocation5], 1

</llo_original>
